<compile_context>
chip_gen: v5e
topology: v5e:2x2
jax: 0.10.0
libtpu: 0.0.40
codegen_flags: <defaults>
</compile_context>

<pallas_src>
import functools

import jax
import jax.numpy as jnp
from jax.experimental import pallas as pl
from jax.experimental.pallas import tpu as pltpu


# ---------------------------------------------------------------- fused attention kernel
def attention_kernel(x_ref, w_ref, b_ref, o_ref, *, num_heads):
    bb, N, C = x_ref.shape            # bb = batch elements handled by this grid step
    HC = num_heads * C

    w = w_ref[...]                    # (C, 2*H*C)  packed [A_h | VP_h] per head
    bias = b_ref[...]                 # (1, C)

    # Static Python loops: bb <= 2 and num_heads = 4; per-iteration live sets are small
    # (the folded formulation has no (N, head_dim) intermediates) and the acc carry
    # chains head iterations, so the 64-vreg file is not at risk.
    for b in range(bb):
        x = x_ref[b]                  # (N, C)

        # One wide MXU matmul produces, for every head, both the "query-side" tile
        # t_h = x @ (scale * Wq_h Wk_h^T) and the "value-proj" tile u_h = x @ (Wv_h Wp_h).
        tu = jnp.dot(x, w, preferred_element_type=jnp.float32)     # (N, 2*H*C)

        acc = jnp.zeros((N, C), jnp.float32)
        for h in range(num_heads):
            t_h = tu[:, h * C:(h + 1) * C]                  # (N, C)
            u_h = tu[:, HC + h * C:HC + (h + 1) * C]        # (N, C)

            # scores: (q_h * scale) @ k_h^T  ==  t_h @ x^T   (contraction over C=32)
            s = jnp.einsum("nc,mc->nm", t_h, x,
                           preferred_element_type=jnp.float32)     # (N, N)
            s = s - jnp.max(s, axis=-1, keepdims=True)
            e = jnp.exp(s)
            p = e / jnp.sum(e, axis=-1, keepdims=True)              # exact softmax

            # (p_h @ v_h) @ Wproj_h  ==  p_h @ u_h ; summed over heads == concat @ Wproj
            acc = acc + jnp.dot(p, u_h, preferred_element_type=jnp.float32)

        o_ref[b] = acc + bias


# ---------------------------------------------------------------- wrapper
def _tensorcores_per_chip():
    # v7x has 2 TensorCores per chip; v5e / v6e have 1. Heuristic only affects the
    # grid choice (never correctness).
    try:
        kind = (jax.devices()[0].device_kind or "").lower()
    except Exception:
        return 1
    return 2 if "7" in kind else 1


def attention_forward(x, H, W, params, num_heads):
    del H, W  # only needed by the sr_ratio > 1 branch (not implemented)
    B, N, C = x.shape
    hd = C // num_heads
    scale = hd ** (-0.5)

    wq, wkv, wproj, bproj = params["wq"], params["wkv"], params["wproj"], params["bproj"]

    # ---- one-time wrapper-side weight folding (weights are tiny) ----
    wq_h = wq.reshape(C, num_heads, hd)            # (C, H, hd)
    wk_h = wkv[:, :C].reshape(C, num_heads, hd)    # (C, H, hd)
    wv_h = wkv[:, C:].reshape(C, num_heads, hd)    # (C, H, hd)
    wp_h = wproj.reshape(num_heads, hd, C)         # (H, hd, C)

    A = scale * jnp.einsum("chd,ehd->hce", wq_h, wk_h)   # (H, C, C): scale*Wq_h Wk_h^T
    VP = jnp.einsum("chd,hde->hce", wv_h, wp_h)          # (H, C, C): Wv_h Wp_h
    a_pack = A.transpose(1, 0, 2).reshape(C, num_heads * C)
    vp_pack = VP.transpose(1, 0, 2).reshape(C, num_heads * C)
    w_all = jnp.concatenate([a_pack, vp_pack], axis=1)   # (C, 2*H*C)
    bias = bproj.reshape(1, C)

    # Single grid step over the whole batch on 1-TC chips; one batch element per
    # ("parallel") grid step on multi-TC chips so both cores stay busy.
    bb = 1 if (_tensorcores_per_chip() > 1 and B > 1) else B
    grid = (B // bb,)

    kern = functools.partial(attention_kernel, num_heads=num_heads)
    return pl.pallas_call(
        kern,
        out_shape=jax.ShapeDtypeStruct((B, N, C), jnp.float32),
        grid=grid,
        in_specs=[
            pl.BlockSpec((bb, N, C), lambda i: (i, 0, 0)),
            pl.BlockSpec((C, 2 * num_heads * C), lambda i: (0, 0)),
            pl.BlockSpec((1, C), lambda i: (0, 0)),
        ],
        out_specs=pl.BlockSpec((bb, N, C), lambda i: (i, 0, 0)),
        compiler_params=pltpu.CompilerParams(dimension_semantics=("parallel",)),
    )(x, w_all, bias)


# ---------------------------------------------------------------- pure-JAX reference
def attention_reference(x, params, num_heads):
    B, N, C = x.shape
    hd = C // num_heads
    scale = hd ** (-0.5)
    wq, wkv, wproj, bproj = params["wq"], params["wkv"], params["wproj"], params["bproj"]

    q = x @ wq                                      # (B, N, C)
    kv = x @ wkv                                    # (B, N, 2C)
    k, v = kv[..., :C], kv[..., C:]
    qh = q.reshape(B, N, num_heads, hd).transpose(0, 2, 1, 3)
    kh = k.reshape(B, N, num_heads, hd).transpose(0, 2, 1, 3)
    vh = v.reshape(B, N, num_heads, hd).transpose(0, 2, 1, 3)
    a = jnp.einsum("bhnd,bhmd->bhnm", qh, kh) * scale
    a = jax.nn.softmax(a, axis=-1)
    o = jnp.einsum("bhnm,bhmd->bhnd", a, vh).transpose(0, 2, 1, 3).reshape(B, N, C)
    return o @ wproj + bproj


# ---------------------------------------------------------------- main
if __name__ == "__main__":
    B, Himg, Wimg = 2, 8, 8
    N = Himg * Wimg          # 64 tokens
    dim = 32
    num_heads = 4            # head_dim = 8

    key = jax.random.PRNGKey(0)
    ks = jax.random.split(key, 5)
    f32 = jnp.float32

    # PyTorch Linear stores weights as (out, in); here pre-transposed to (in, out).
    # qkv_bias=False per module default; proj has a bias (random here to exercise the add).
    params = {
        "wq":    0.02 * jax.random.normal(ks[0], (dim, dim), f32),
        "wkv":   0.02 * jax.random.normal(ks[1], (dim, 2 * dim), f32),
        "wproj": 0.02 * jax.random.normal(ks[2], (dim, dim), f32),
        "bproj": 0.02 * jax.random.normal(ks[3], (dim,), f32),
    }
    x = jax.random.normal(ks[4], (B, N, dim), f32)

    out = jax.block_until_ready(attention_forward(x, Himg, Wimg, params, num_heads))
    ref = jax.block_until_ready(attention_reference(x, params, num_heads))

    assert out.shape == (B, N, dim) and out.dtype == jnp.float32
    assert jnp.allclose(out, ref, rtol=1e-4, atol=1e-4), (
        float(jnp.max(jnp.abs(out - ref))))

    print("KERNEL_OK")
</pallas_src>

<mosaic_0001>
module attributes {stable_mosaic.version = 11 : i64} {
  func.func @attention_kernel(%arg0: i32, %arg1: memref<2x64x32xf32, #tpu.memory_space<vmem>>, %arg2: memref<32x256xf32, #tpu.memory_space<vmem>>, %arg3: memref<1x32xf32, #tpu.memory_space<vmem>>, %arg4: memref<2x64x32xf32, #tpu.memory_space<vmem>>) attributes {dimension_semantics = [#tpu.dimension_semantics<parallel>], iteration_bounds = array<i64: 1>, scalar_prefetch = 0 : i64, scratch_operands = 0 : i64, tpu.core_type = #tpu.core_type<tc>, window_params = [{transform_indices = @transform_0, window_bounds = array<i64: 2, 64, 32>}, {pipeline_mode = #tpu.pipeline_mode<synchronous>, transform_indices = @transform_1, window_bounds = array<i64: 32, 256>}, {pipeline_mode = #tpu.pipeline_mode<synchronous>, transform_indices = @transform_2, window_bounds = array<i64: 1, 32>}, {transform_indices = @transform_3, window_bounds = array<i64: 2, 64, 32>}]} {
    %c0 = arith.constant 0 : index
    %c0_0 = arith.constant 0 : index
    %0 = vector.load %arg2[%c0, %c0_0] : memref<32x256xf32, #tpu.memory_space<vmem>>, vector<32x256xf32>
    %c0_1 = arith.constant 0 : index
    %c0_2 = arith.constant 0 : index
    %1 = vector.load %arg3[%c0_1, %c0_2] : memref<1x32xf32, #tpu.memory_space<vmem>>, vector<1x32xf32>
    %c0_3 = arith.constant 0 : index
    %c0_4 = arith.constant 0 : index
    %c0_5 = arith.constant 0 : index
    %2 = vector.load %arg1[%c0_3, %c0_4, %c0_5] : memref<2x64x32xf32, #tpu.memory_space<vmem>>, vector<1x64x32xf32>
    %3 = vector.shape_cast %2 : vector<1x64x32xf32> to vector<64x32xf32>
    %cst = arith.constant dense<0.000000e+00> : vector<64x256xf32>
    %4 = tpu.matmul %3, %0, %cst {dimension_numbers = #tpu.dot_dimension_numbers<[1], [0], [0], [1], [0, 0, 1, 1], [], []>} : vector<64x32xf32>, vector<32x256xf32>, vector<64x256xf32> -> vector<64x256xf32>
    %cst_6 = arith.constant 0.000000e+00 : f32
    %5 = vector.broadcast %cst_6 : f32 to vector<64x32xf32>
    %6 = vector.extract_strided_slice %4 {offsets = [0, 0], sizes = [64, 32], strides = [1, 1]} : vector<64x256xf32> to vector<64x32xf32>
    %7 = vector.extract_strided_slice %4 {offsets = [0, 128], sizes = [64, 32], strides = [1, 1]} : vector<64x256xf32> to vector<64x32xf32>
    "tpu.trace_start"() <{level = 10 : i32, message = "nc,mc->nm"}> : () -> ()
    %cst_7 = arith.constant dense<0.000000e+00> : vector<64x64xf32>
    %8 = tpu.matmul %6, %3, %cst_7 {dimension_numbers = #tpu.dot_dimension_numbers<[1], [1], [0], [0], [0, 0, 1, 0], [], []>} : vector<64x32xf32>, vector<64x32xf32>, vector<64x64xf32> -> vector<64x64xf32>
    "tpu.trace_stop"() : () -> ()
    %cst_8 = arith.constant dense<0xFF800000> : vector<64xf32>
    %9 = vector.multi_reduction <maximumf>, %8, %cst_8 [1] : vector<64x64xf32> to vector<64xf32>
    %10 = vector.shape_cast %9 : vector<64xf32> to vector<64x1xf32>
    %11 = vector.broadcast %10 : vector<64x1xf32> to vector<64x64xf32>
    %12 = arith.subf %8, %11 : vector<64x64xf32>
    %13 = math.exp %12 : vector<64x64xf32>
    %cst_9 = arith.constant dense<0.000000e+00> : vector<64xf32>
    %14 = vector.multi_reduction <add>, %13, %cst_9 [1] : vector<64x64xf32> to vector<64xf32>
    %15 = vector.shape_cast %14 : vector<64xf32> to vector<64x1xf32>
    %16 = vector.broadcast %15 : vector<64x1xf32> to vector<64x64xf32>
    %17 = arith.divf %13, %16 : vector<64x64xf32>
    %cst_10 = arith.constant dense<0.000000e+00> : vector<64x32xf32>
    %18 = tpu.matmul %17, %7, %cst_10 {dimension_numbers = #tpu.dot_dimension_numbers<[1], [0], [0], [1], [0, 0, 1, 1], [], []>} : vector<64x64xf32>, vector<64x32xf32>, vector<64x32xf32> -> vector<64x32xf32>
    %19 = arith.addf %5, %18 : vector<64x32xf32>
    %20 = vector.extract_strided_slice %4 {offsets = [0, 32], sizes = [64, 32], strides = [1, 1]} : vector<64x256xf32> to vector<64x32xf32>
    %21 = vector.extract_strided_slice %4 {offsets = [0, 160], sizes = [64, 32], strides = [1, 1]} : vector<64x256xf32> to vector<64x32xf32>
    "tpu.trace_start"() <{level = 10 : i32, message = "nc,mc->nm"}> : () -> ()
    %cst_11 = arith.constant dense<0.000000e+00> : vector<64x64xf32>
    %22 = tpu.matmul %20, %3, %cst_11 {dimension_numbers = #tpu.dot_dimension_numbers<[1], [1], [0], [0], [0, 0, 1, 0], [], []>} : vector<64x32xf32>, vector<64x32xf32>, vector<64x64xf32> -> vector<64x64xf32>
    "tpu.trace_stop"() : () -> ()
    %cst_12 = arith.constant dense<0xFF800000> : vector<64xf32>
    %23 = vector.multi_reduction <maximumf>, %22, %cst_12 [1] : vector<64x64xf32> to vector<64xf32>
    %24 = vector.shape_cast %23 : vector<64xf32> to vector<64x1xf32>
    %25 = vector.broadcast %24 : vector<64x1xf32> to vector<64x64xf32>
    %26 = arith.subf %22, %25 : vector<64x64xf32>
    %27 = math.exp %26 : vector<64x64xf32>
    %cst_13 = arith.constant dense<0.000000e+00> : vector<64xf32>
    %28 = vector.multi_reduction <add>, %27, %cst_13 [1] : vector<64x64xf32> to vector<64xf32>
    %29 = vector.shape_cast %28 : vector<64xf32> to vector<64x1xf32>
    %30 = vector.broadcast %29 : vector<64x1xf32> to vector<64x64xf32>
    %31 = arith.divf %27, %30 : vector<64x64xf32>
    %cst_14 = arith.constant dense<0.000000e+00> : vector<64x32xf32>
    %32 = tpu.matmul %31, %21, %cst_14 {dimension_numbers = #tpu.dot_dimension_numbers<[1], [0], [0], [1], [0, 0, 1, 1], [], []>} : vector<64x64xf32>, vector<64x32xf32>, vector<64x32xf32> -> vector<64x32xf32>
    %33 = arith.addf %19, %32 : vector<64x32xf32>
    %34 = vector.extract_strided_slice %4 {offsets = [0, 64], sizes = [64, 32], strides = [1, 1]} : vector<64x256xf32> to vector<64x32xf32>
    %35 = vector.extract_strided_slice %4 {offsets = [0, 192], sizes = [64, 32], strides = [1, 1]} : vector<64x256xf32> to vector<64x32xf32>
    "tpu.trace_start"() <{level = 10 : i32, message = "nc,mc->nm"}> : () -> ()
    %cst_15 = arith.constant dense<0.000000e+00> : vector<64x64xf32>
    %36 = tpu.matmul %34, %3, %cst_15 {dimension_numbers = #tpu.dot_dimension_numbers<[1], [1], [0], [0], [0, 0, 1, 0], [], []>} : vector<64x32xf32>, vector<64x32xf32>, vector<64x64xf32> -> vector<64x64xf32>
    "tpu.trace_stop"() : () -> ()
    %cst_16 = arith.constant dense<0xFF800000> : vector<64xf32>
    %37 = vector.multi_reduction <maximumf>, %36, %cst_16 [1] : vector<64x64xf32> to vector<64xf32>
    %38 = vector.shape_cast %37 : vector<64xf32> to vector<64x1xf32>
    %39 = vector.broadcast %38 : vector<64x1xf32> to vector<64x64xf32>
    %40 = arith.subf %36, %39 : vector<64x64xf32>
    %41 = math.exp %40 : vector<64x64xf32>
    %cst_17 = arith.constant dense<0.000000e+00> : vector<64xf32>
    %42 = vector.multi_reduction <add>, %41, %cst_17 [1] : vector<64x64xf32> to vector<64xf32>
    %43 = vector.shape_cast %42 : vector<64xf32> to vector<64x1xf32>
    %44 = vector.broadcast %43 : vector<64x1xf32> to vector<64x64xf32>
    %45 = arith.divf %41, %44 : vector<64x64xf32>
    %cst_18 = arith.constant dense<0.000000e+00> : vector<64x32xf32>
    %46 = tpu.matmul %45, %35, %cst_18 {dimension_numbers = #tpu.dot_dimension_numbers<[1], [0], [0], [1], [0, 0, 1, 1], [], []>} : vector<64x64xf32>, vector<64x32xf32>, vector<64x32xf32> -> vector<64x32xf32>
    %47 = arith.addf %33, %46 : vector<64x32xf32>
    %48 = vector.extract_strided_slice %4 {offsets = [0, 96], sizes = [64, 32], strides = [1, 1]} : vector<64x256xf32> to vector<64x32xf32>
    %49 = vector.extract_strided_slice %4 {offsets = [0, 224], sizes = [64, 32], strides = [1, 1]} : vector<64x256xf32> to vector<64x32xf32>
    "tpu.trace_start"() <{level = 10 : i32, message = "nc,mc->nm"}> : () -> ()
    %cst_19 = arith.constant dense<0.000000e+00> : vector<64x64xf32>
    %50 = tpu.matmul %48, %3, %cst_19 {dimension_numbers = #tpu.dot_dimension_numbers<[1], [1], [0], [0], [0, 0, 1, 0], [], []>} : vector<64x32xf32>, vector<64x32xf32>, vector<64x64xf32> -> vector<64x64xf32>
    "tpu.trace_stop"() : () -> ()
    %cst_20 = arith.constant dense<0xFF800000> : vector<64xf32>
    %51 = vector.multi_reduction <maximumf>, %50, %cst_20 [1] : vector<64x64xf32> to vector<64xf32>
    %52 = vector.shape_cast %51 : vector<64xf32> to vector<64x1xf32>
    %53 = vector.broadcast %52 : vector<64x1xf32> to vector<64x64xf32>
    %54 = arith.subf %50, %53 : vector<64x64xf32>
    %55 = math.exp %54 : vector<64x64xf32>
    %cst_21 = arith.constant dense<0.000000e+00> : vector<64xf32>
    %56 = vector.multi_reduction <add>, %55, %cst_21 [1] : vector<64x64xf32> to vector<64xf32>
    %57 = vector.shape_cast %56 : vector<64xf32> to vector<64x1xf32>
    %58 = vector.broadcast %57 : vector<64x1xf32> to vector<64x64xf32>
    %59 = arith.divf %55, %58 : vector<64x64xf32>
    %cst_22 = arith.constant dense<0.000000e+00> : vector<64x32xf32>
    %60 = tpu.matmul %59, %49, %cst_22 {dimension_numbers = #tpu.dot_dimension_numbers<[1], [0], [0], [1], [0, 0, 1, 1], [], []>} : vector<64x64xf32>, vector<64x32xf32>, vector<64x32xf32> -> vector<64x32xf32>
    %61 = arith.addf %47, %60 : vector<64x32xf32>
    %62 = vector.broadcast %1 : vector<1x32xf32> to vector<64x32xf32>
    %63 = arith.addf %61, %62 : vector<64x32xf32>
    %c0_23 = arith.constant 0 : index
    %c0_24 = arith.constant 0 : index
    %c0_25 = arith.constant 0 : index
    %64 = vector.load %arg4[%c0_23, %c0_24, %c0_25] : memref<2x64x32xf32, #tpu.memory_space<vmem>>, vector<1x64x32xf32>
    %65 = vector.shape_cast %64 : vector<1x64x32xf32> to vector<64x32xf32>
    %66 = vector.shape_cast %63 : vector<64x32xf32> to vector<1x64x32xf32>
    tpu.vector_store %arg4[%c0_23, %c0_24, %c0_25], %66 {strides = array<i32>} : memref<2x64x32xf32, #tpu.memory_space<vmem>>, vector<1x64x32xf32>,
    %c1 = arith.constant 1 : index
    %c0_26 = arith.constant 0 : index
    %c0_27 = arith.constant 0 : index
    %67 = vector.load %arg1[%c1, %c0_26, %c0_27] : memref<2x64x32xf32, #tpu.memory_space<vmem>>, vector<1x64x32xf32>
    %68 = vector.shape_cast %67 : vector<1x64x32xf32> to vector<64x32xf32>
    %cst_28 = arith.constant dense<0.000000e+00> : vector<64x256xf32>
    %69 = tpu.matmul %68, %0, %cst_28 {dimension_numbers = #tpu.dot_dimension_numbers<[1], [0], [0], [1], [0, 0, 1, 1], [], []>} : vector<64x32xf32>, vector<32x256xf32>, vector<64x256xf32> -> vector<64x256xf32>
    %cst_29 = arith.constant 0.000000e+00 : f32
    %70 = vector.broadcast %cst_29 : f32 to vector<64x32xf32>
    %71 = vector.extract_strided_slice %69 {offsets = [0, 0], sizes = [64, 32], strides = [1, 1]} : vector<64x256xf32> to vector<64x32xf32>
    %72 = vector.extract_strided_slice %69 {offsets = [0, 128], sizes = [64, 32], strides = [1, 1]} : vector<64x256xf32> to vector<64x32xf32>
    "tpu.trace_start"() <{level = 10 : i32, message = "nc,mc->nm"}> : () -> ()
    %cst_30 = arith.constant dense<0.000000e+00> : vector<64x64xf32>
    %73 = tpu.matmul %71, %68, %cst_30 {dimension_numbers = #tpu.dot_dimension_numbers<[1], [1], [0], [0], [0, 0, 1, 0], [], []>} : vector<64x32xf32>, vector<64x32xf32>, vector<64x64xf32> -> vector<64x64xf32>
    "tpu.trace_stop"() : () -> ()
    %cst_31 = arith.constant dense<0xFF800000> : vector<64xf32>
    %74 = vector.multi_reduction <maximumf>, %73, %cst_31 [1] : vector<64x64xf32> to vector<64xf32>
    %75 = vector.shape_cast %74 : vector<64xf32> to vector<64x1xf32>
    %76 = vector.broadcast %75 : vector<64x1xf32> to vector<64x64xf32>
    %77 = arith.subf %73, %76 : vector<64x64xf32>
    %78 = math.exp %77 : vector<64x64xf32>
    %cst_32 = arith.constant dense<0.000000e+00> : vector<64xf32>
    %79 = vector.multi_reduction <add>, %78, %cst_32 [1] : vector<64x64xf32> to vector<64xf32>
    %80 = vector.shape_cast %79 : vector<64xf32> to vector<64x1xf32>
    %81 = vector.broadcast %80 : vector<64x1xf32> to vector<64x64xf32>
    %82 = arith.divf %78, %81 : vector<64x64xf32>
    %cst_33 = arith.constant dense<0.000000e+00> : vector<64x32xf32>
    %83 = tpu.matmul %82, %72, %cst_33 {dimension_numbers = #tpu.dot_dimension_numbers<[1], [0], [0], [1], [0, 0, 1, 1], [], []>} : vector<64x64xf32>, vector<64x32xf32>, vector<64x32xf32> -> vector<64x32xf32>
    %84 = arith.addf %70, %83 : vector<64x32xf32>
    %85 = vector.extract_strided_slice %69 {offsets = [0, 32], sizes = [64, 32], strides = [1, 1]} : vector<64x256xf32> to vector<64x32xf32>
    %86 = vector.extract_strided_slice %69 {offsets = [0, 160], sizes = [64, 32], strides = [1, 1]} : vector<64x256xf32> to vector<64x32xf32>
    "tpu.trace_start"() <{level = 10 : i32, message = "nc,mc->nm"}> : () -> ()
    %cst_34 = arith.constant dense<0.000000e+00> : vector<64x64xf32>
    %87 = tpu.matmul %85, %68, %cst_34 {dimension_numbers = #tpu.dot_dimension_numbers<[1], [1], [0], [0], [0, 0, 1, 0], [], []>} : vector<64x32xf32>, vector<64x32xf32>, vector<64x64xf32> -> vector<64x64xf32>
    "tpu.trace_stop"() : () -> ()
    %cst_35 = arith.constant dense<0xFF800000> : vector<64xf32>
    %88 = vector.multi_reduction <maximumf>, %87, %cst_35 [1] : vector<64x64xf32> to vector<64xf32>
    %89 = vector.shape_cast %88 : vector<64xf32> to vector<64x1xf32>
    %90 = vector.broadcast %89 : vector<64x1xf32> to vector<64x64xf32>
    %91 = arith.subf %87, %90 : vector<64x64xf32>
    %92 = math.exp %91 : vector<64x64xf32>
    %cst_36 = arith.constant dense<0.000000e+00> : vector<64xf32>
    %93 = vector.multi_reduction <add>, %92, %cst_36 [1] : vector<64x64xf32> to vector<64xf32>
    %94 = vector.shape_cast %93 : vector<64xf32> to vector<64x1xf32>
    %95 = vector.broadcast %94 : vector<64x1xf32> to vector<64x64xf32>
    %96 = arith.divf %92, %95 : vector<64x64xf32>
    %cst_37 = arith.constant dense<0.000000e+00> : vector<64x32xf32>
    %97 = tpu.matmul %96, %86, %cst_37 {dimension_numbers = #tpu.dot_dimension_numbers<[1], [0], [0], [1], [0, 0, 1, 1], [], []>} : vector<64x64xf32>, vector<64x32xf32>, vector<64x32xf32> -> vector<64x32xf32>
    %98 = arith.addf %84, %97 : vector<64x32xf32>
    %99 = vector.extract_strided_slice %69 {offsets = [0, 64], sizes = [64, 32], strides = [1, 1]} : vector<64x256xf32> to vector<64x32xf32>
    %100 = vector.extract_strided_slice %69 {offsets = [0, 192], sizes = [64, 32], strides = [1, 1]} : vector<64x256xf32> to vector<64x32xf32>
    "tpu.trace_start"() <{level = 10 : i32, message = "nc,mc->nm"}> : () -> ()
    %cst_38 = arith.constant dense<0.000000e+00> : vector<64x64xf32>
    %101 = tpu.matmul %99, %68, %cst_38 {dimension_numbers = #tpu.dot_dimension_numbers<[1], [1], [0], [0], [0, 0, 1, 0], [], []>} : vector<64x32xf32>, vector<64x32xf32>, vector<64x64xf32> -> vector<64x64xf32>
    "tpu.trace_stop"() : () -> ()
    %cst_39 = arith.constant dense<0xFF800000> : vector<64xf32>
    %102 = vector.multi_reduction <maximumf>, %101, %cst_39 [1] : vector<64x64xf32> to vector<64xf32>
    %103 = vector.shape_cast %102 : vector<64xf32> to vector<64x1xf32>
    %104 = vector.broadcast %103 : vector<64x1xf32> to vector<64x64xf32>
    %105 = arith.subf %101, %104 : vector<64x64xf32>
    %106 = math.exp %105 : vector<64x64xf32>
    %cst_40 = arith.constant dense<0.000000e+00> : vector<64xf32>
    %107 = vector.multi_reduction <add>, %106, %cst_40 [1] : vector<64x64xf32> to vector<64xf32>
    %108 = vector.shape_cast %107 : vector<64xf32> to vector<64x1xf32>
    %109 = vector.broadcast %108 : vector<64x1xf32> to vector<64x64xf32>
    %110 = arith.divf %106, %109 : vector<64x64xf32>
    %cst_41 = arith.constant dense<0.000000e+00> : vector<64x32xf32>
    %111 = tpu.matmul %110, %100, %cst_41 {dimension_numbers = #tpu.dot_dimension_numbers<[1], [0], [0], [1], [0, 0, 1, 1], [], []>} : vector<64x64xf32>, vector<64x32xf32>, vector<64x32xf32> -> vector<64x32xf32>
    %112 = arith.addf %98, %111 : vector<64x32xf32>
    %113 = vector.extract_strided_slice %69 {offsets = [0, 96], sizes = [64, 32], strides = [1, 1]} : vector<64x256xf32> to vector<64x32xf32>
    %114 = vector.extract_strided_slice %69 {offsets = [0, 224], sizes = [64, 32], strides = [1, 1]} : vector<64x256xf32> to vector<64x32xf32>
    "tpu.trace_start"() <{level = 10 : i32, message = "nc,mc->nm"}> : () -> ()
    %cst_42 = arith.constant dense<0.000000e+00> : vector<64x64xf32>
    %115 = tpu.matmul %113, %68, %cst_42 {dimension_numbers = #tpu.dot_dimension_numbers<[1], [1], [0], [0], [0, 0, 1, 0], [], []>} : vector<64x32xf32>, vector<64x32xf32>, vector<64x64xf32> -> vector<64x64xf32>
    "tpu.trace_stop"() : () -> ()
    %cst_43 = arith.constant dense<0xFF800000> : vector<64xf32>
    %116 = vector.multi_reduction <maximumf>, %115, %cst_43 [1] : vector<64x64xf32> to vector<64xf32>
    %117 = vector.shape_cast %116 : vector<64xf32> to vector<64x1xf32>
    %118 = vector.broadcast %117 : vector<64x1xf32> to vector<64x64xf32>
    %119 = arith.subf %115, %118 : vector<64x64xf32>
    %120 = math.exp %119 : vector<64x64xf32>
    %cst_44 = arith.constant dense<0.000000e+00> : vector<64xf32>
    %121 = vector.multi_reduction <add>, %120, %cst_44 [1] : vector<64x64xf32> to vector<64xf32>
    %122 = vector.shape_cast %121 : vector<64xf32> to vector<64x1xf32>
    %123 = vector.broadcast %122 : vector<64x1xf32> to vector<64x64xf32>
    %124 = arith.divf %120, %123 : vector<64x64xf32>
    %cst_45 = arith.constant dense<0.000000e+00> : vector<64x32xf32>
    %125 = tpu.matmul %124, %114, %cst_45 {dimension_numbers = #tpu.dot_dimension_numbers<[1], [0], [0], [1], [0, 0, 1, 1], [], []>} : vector<64x64xf32>, vector<64x32xf32>, vector<64x32xf32> -> vector<64x32xf32>
    %126 = arith.addf %112, %125 : vector<64x32xf32>
    %127 = vector.broadcast %1 : vector<1x32xf32> to vector<64x32xf32>
    %128 = arith.addf %126, %127 : vector<64x32xf32>
    %c1_46 = arith.constant 1 : index
    %c0_47 = arith.constant 0 : index
    %c0_48 = arith.constant 0 : index
    %129 = vector.load %arg4[%c1_46, %c0_47, %c0_48] : memref<2x64x32xf32, #tpu.memory_space<vmem>>, vector<1x64x32xf32>
    %130 = vector.shape_cast %129 : vector<1x64x32xf32> to vector<64x32xf32>
    %131 = vector.shape_cast %128 : vector<64x32xf32> to vector<1x64x32xf32>
    tpu.vector_store %arg4[%c1_46, %c0_47, %c0_48], %131 {strides = array<i32>} : memref<2x64x32xf32, #tpu.memory_space<vmem>>, vector<1x64x32xf32>,
    return
  }
  func.func @transform_0(%arg0: i32) -> (i32, i32, i32) {
    %c0_i32 = arith.constant 0 : i32
    %c0_i32_0 = arith.constant 0 : i32
    %c0_i32_1 = arith.constant 0 : i32
    return %arg0, %c0_i32, %c0_i32_0 : i32, i32, i32
  }
  func.func @transform_1(%arg0: i32) -> (i32, i32) {
    %c0_i32 = arith.constant 0 : i32
    %c0_i32_0 = arith.constant 0 : i32
    %c0_i32_1 = arith.constant 0 : i32
    return %c0_i32, %c0_i32_0 : i32, i32
  }
  func.func @transform_2(%arg0: i32) -> (i32, i32) {
    %c0_i32 = arith.constant 0 : i32
    %c0_i32_0 = arith.constant 0 : i32
    %c0_i32_1 = arith.constant 0 : i32
    return %c0_i32, %c0_i32_0 : i32, i32
  }
  func.func @transform_3(%arg0: i32) -> (i32, i32, i32) {
    %c0_i32 = arith.constant 0 : i32
    %c0_i32_0 = arith.constant 0 : i32
    %c0_i32_1 = arith.constant 0 : i32
    return %arg0, %c0_i32, %c0_i32_0 : i32, i32, i32
  }
}

</mosaic_0001>

<llo_original>
// kernel: tpu_custom_call.1
$region0: #{tpu_custom_call.1}
  #allocation0 [shape = 'u32[]', space=smem, size = 0x4, offset = 0x4, fixed_abs, tag = 'smem constant byte address 0x4 - core index']
  #allocation1 [shape = 'u32[72,128]{1,0:T(1,128)}', space=vmem, size = 0x9000, scoped, tag = 'internal scratch']
  %s0 = inlined_call_operand.vmem [shape: f32[2,64,32], index: 0, kind: input, shape index: {}]
  %s1 = inlined_call_operand.vmem [shape: f32[32,256], index: 1, kind: input, shape index: {}]
  %s2 = inlined_call_operand.vmem [shape: f32[1,32], index: 2, kind: input, shape index: {}]
  %s3 = inlined_call_operand.vmem [shape: f32[2,64,32], index: 3, kind: output, shape index: {}]
  %s4 = sld [smem:[#allocation0]]
  $region22: #{tpu_custom_call.1} parent=0
    _
  %s6 = ssub.s32 1, %s4
  %s7 = scalar_select 0, %s6, %s4
  // Predicated region
  $region2: #{tpu_custom_call.1} parent=0 // pred_check
    _
  $region3: #{tpu_custom_call.1} parent=0 // pred_check_branch
    %9 = sbr.rel (0) target = $region5
  $region4: #{tpu_custom_call.1} parent=0 // pred_region
    _
  $region5: #{tpu_custom_call.1} parent=0 // pred_fallthru
    _
  // Predicated region
  $region6: #{tpu_custom_call.1} parent=0 // pred_check
    _
  $region7: #{tpu_custom_call.1} parent=0 // pred_check_branch
    %11 = sbr.rel (0) target = $region9
  $region8: #{tpu_custom_call.1} parent=0 // pred_region
    _
  $region9: #{tpu_custom_call.1} parent=0 // pred_fallthru
    _
  // Predicated region
  $region10: #{tpu_custom_call.1} parent=0 // pred_check
    _
  $region11: #{tpu_custom_call.1} parent=0 // pred_check_branch
    %13 = sbr.rel (0) target = $region13
  $region12: #{tpu_custom_call.1} parent=0 // pred_region
    _
  $region13: #{tpu_custom_call.1} parent=0 // pred_fallthru
    _
  %v14 = vld [vmem:[%s1] sm:$0xff]
  %v15 = vld [vmem:[%s1 + $0x8] sm:$0xff]
  %v16 = vld [vmem:[%s1 + $0x10] sm:$0xff]
  %v17 = vld [vmem:[%s1 + $0x18] sm:$0xff]
  %v18 = vld [vmem:[%s1 + $0x20] sm:$0xff]
  %v19 = vld [vmem:[%s1 + $0x28] sm:$0xff]
  %v20 = vld [vmem:[%s1 + $0x30] sm:$0xff]
  %v21 = vld [vmem:[%s1 + $0x38] sm:$0xff]
  %v22 = vld [vmem:[%s2] sm:$0x1]
  %v23 = vld [vmem:[%s0] sm:$0xff]
  %v24 = vld [vmem:[%s0 + $0x8] sm:$0xff]
  %v25 = vld [vmem:[%s0 + $0x10] sm:$0xff]
  %v26 = vld [vmem:[%s0 + $0x18] sm:$0xff]
  %v27 = vld [vmem:[%s0 + $0x20] sm:$0xff]
  %v28 = vld [vmem:[%s0 + $0x28] sm:$0xff]
  %v29 = vld [vmem:[%s0 + $0x30] sm:$0xff]
  %v30 = vld [vmem:[%s0 + $0x38] sm:$0xff]
  %vm31 = vcmask 261120
  %v33 = vsel %vm31, %v23, 0
  %v36 = vsel %vm31, %v24, 0
  %v39 = vsel %vm31, %v25, 0
  %v42 = vsel %vm31, %v26, 0
  %v45 = vsel %vm31, %v27, 0
  %v48 = vsel %vm31, %v28, 0
  %v51 = vsel %vm31, %v29, 0
  %v54 = vsel %vm31, %v30, 0
  %56 = vmatpush.msra.mxu0 0.0
  %57 = vmatpush.msra.mxu0 0.0
  %58 = vmatpush.msra.mxu0 0.0
  %59 = vmatpush.msra.mxu0 0.0
  %60 = vmatpush.msra.mxu0 0.0
  %61 = vmatpush.msra.mxu0 0.0
  %62 = vmatpush.msra.mxu0 0.0
  %63 = vmatpush.msra.mxu0 0.0
  %64 = vmatpush.msra.mxu0 0.0
  %65 = vmatpush.msra.mxu0 0.0
  %66 = vmatpush.msra.mxu0 0.0
  %67 = vmatpush.msra.mxu0 0.0
  %68 = vmatpush.msra.mxu0 %v20
  %69 = vmatpush.msra.mxu0 %v18
  %70 = vmatpush.msra.mxu0 %v16
  %71 = vmatpush.msra.mxu0 %v14
  %72 = vmatmul.f32.gmra.mxu0 %v33
  %v73 = vpop.f32.mrf.mxu0
  %v74 = vadd.f32 0.0, %v73
  %75 = vmatmul.f32.gmra.mxu0 %v36
  %v76 = vpop.f32.mrf.mxu0
  %v77 = vadd.f32 0.0, %v76
  %78 = vmatmul.f32.gmra.mxu0 %v39
  %v79 = vpop.f32.mrf.mxu0
  %v80 = vadd.f32 0.0, %v79
  %81 = vmatmul.f32.gmra.mxu0 %v42
  %v82 = vpop.f32.mrf.mxu0
  %v83 = vadd.f32 0.0, %v82
  %84 = vmatmul.f32.gmra.mxu0 %v45
  %v85 = vpop.f32.mrf.mxu0
  %v86 = vadd.f32 0.0, %v85
  %87 = vmatmul.f32.gmra.mxu0 %v48
  %v88 = vpop.f32.mrf.mxu0
  %v89 = vadd.f32 0.0, %v88
  %90 = vmatmul.f32.gmra.mxu0 %v51
  %v91 = vpop.f32.mrf.mxu0
  %v92 = vadd.f32 0.0, %v91
  %93 = vmatmul.f32.gmra.mxu0 %v54
  %v94 = vpop.f32.mrf.mxu0
  %v95 = vadd.f32 0.0, %v94
  %96 = vdwg.mxu0
  %97 = vmatpush.msra.mxu0 0.0
  %98 = vmatpush.msra.mxu0 0.0
  %99 = vmatpush.msra.mxu0 0.0
  %100 = vmatpush.msra.mxu0 0.0
  %101 = vmatpush.msra.mxu0 0.0
  %102 = vmatpush.msra.mxu0 0.0
  %103 = vmatpush.msra.mxu0 0.0
  %104 = vmatpush.msra.mxu0 0.0
  %105 = vmatpush.msra.mxu0 0.0
  %106 = vmatpush.msra.mxu0 0.0
  %107 = vmatpush.msra.mxu0 0.0
  %108 = vmatpush.msra.mxu0 0.0
  %109 = vmatpush.msra.mxu0 %v21
  %110 = vmatpush.msra.mxu0 %v19
  %111 = vmatpush.msra.mxu0 %v17
  %112 = vmatpush.msra.mxu0 %v15
  %113 = vmatmul.f32.gmra.mxu0 %v33
  %v114 = vpop.f32.mrf.mxu0
  %v115 = vadd.f32 0.0, %v114
  %116 = vmatmul.f32.gmra.mxu0 %v36
  %v117 = vpop.f32.mrf.mxu0
  %v118 = vadd.f32 0.0, %v117
  %119 = vmatmul.f32.gmra.mxu0 %v39
  %v120 = vpop.f32.mrf.mxu0
  %v121 = vadd.f32 0.0, %v120
  %122 = vmatmul.f32.gmra.mxu0 %v42
  %v123 = vpop.f32.mrf.mxu0
  %v124 = vadd.f32 0.0, %v123
  %125 = vmatmul.f32.gmra.mxu0 %v45
  %v126 = vpop.f32.mrf.mxu0
  %v127 = vadd.f32 0.0, %v126
  %128 = vmatmul.f32.gmra.mxu0 %v48
  %v129 = vpop.f32.mrf.mxu0
  %v130 = vadd.f32 0.0, %v129
  %131 = vmatmul.f32.gmra.mxu0 %v51
  %v132 = vpop.f32.mrf.mxu0
  %v133 = vadd.f32 0.0, %v132
  %134 = vmatmul.f32.gmra.mxu0 %v54
  %v135 = vpop.f32.mrf.mxu0
  %v136 = vadd.f32 0.0, %v135
  %137 = vdwg.mxu0
  %v139 = vsel %vm31, %v74, 0
  %v142 = vsel %vm31, %v77, 0
  %v145 = vsel %vm31, %v80, 0
  %v148 = vsel %vm31, %v83, 0
  %v151 = vsel %vm31, %v86, 0
  %v154 = vsel %vm31, %v89, 0
  %v157 = vsel %vm31, %v92, 0
  %v160 = vsel %vm31, %v95, 0
  %162 = vmatpush.xpose.msra.mxu0 0.0
  %163 = vmatpush.xpose.msra.mxu0 0.0
  %164 = vmatpush.xpose.msra.mxu0 0.0
  %165 = vmatpush.xpose.msra.mxu0 0.0
  %166 = vmatpush.xpose.msra.mxu0 0.0
  %167 = vmatpush.xpose.msra.mxu0 0.0
  %168 = vmatpush.xpose.msra.mxu0 0.0
  %169 = vmatpush.xpose.msra.mxu0 0.0
  %170 = vmatpush.xpose.msra.mxu0 %v54
  %171 = vmatpush.xpose.msra.mxu0 %v51
  %172 = vmatpush.xpose.msra.mxu0 %v48
  %173 = vmatpush.xpose.msra.mxu0 %v45
  %174 = vmatpush.xpose.msra.mxu0 %v42
  %175 = vmatpush.xpose.msra.mxu0 %v39
  %176 = vmatpush.xpose.msra.mxu0 %v36
  %177 = vmatpush.xpose.msra.mxu0 %v33
  %178 = vmatmul.f32.gmra.mxu0 %v139
  %v179 = vpop.f32.mrf.mxu0
  %v180 = vadd.f32 0.0, %v179
  %181 = vmatmul.f32.gmra.mxu0 %v142
  %v182 = vpop.f32.mrf.mxu0
  %v183 = vadd.f32 0.0, %v182
  %184 = vmatmul.f32.gmra.mxu0 %v145
  %v185 = vpop.f32.mrf.mxu0
  %v186 = vadd.f32 0.0, %v185
  %187 = vmatmul.f32.gmra.mxu0 %v148
  %v188 = vpop.f32.mrf.mxu0
  %v189 = vadd.f32 0.0, %v188
  %190 = vmatmul.f32.gmra.mxu0 %v151
  %v191 = vpop.f32.mrf.mxu0
  %v192 = vadd.f32 0.0, %v191
  %193 = vmatmul.f32.gmra.mxu0 %v154
  %v194 = vpop.f32.mrf.mxu0
  %v195 = vadd.f32 0.0, %v194
  %196 = vmatmul.f32.gmra.mxu0 %v157
  %v197 = vpop.f32.mrf.mxu0
  %v198 = vadd.f32 0.0, %v197
  %199 = vmatmul.f32.gmra.mxu0 %v160
  %v200 = vpop.f32.mrf.mxu0
  %v201 = vadd.f32 0.0, %v200
  %202 = vdwg.mxu0
  %vm203 = vcmask 523264
  %v204 = vsel %vm203, %v180, -inf
  %205 = vmax.xlane.f32.xlu0 %v204
  %v206 = vpop.xlane.xlu0 %205
  %v207 = vsel %vm203, %v183, -inf
  %208 = vmax.xlane.f32.xlu0 %v207
  %v209 = vpop.xlane.xlu0 %208
  %v210 = vsel %vm203, %v186, -inf
  %211 = vmax.xlane.f32.xlu0 %v210
  %v212 = vpop.xlane.xlu0 %211
  %v213 = vsel %vm203, %v189, -inf
  %214 = vmax.xlane.f32.xlu0 %v213
  %v215 = vpop.xlane.xlu0 %214
  %v216 = vsel %vm203, %v192, -inf
  %217 = vmax.xlane.f32.xlu0 %v216
  %v218 = vpop.xlane.xlu0 %217
  %v219 = vsel %vm203, %v195, -inf
  %220 = vmax.xlane.f32.xlu0 %v219
  %v221 = vpop.xlane.xlu0 %220
  %v222 = vsel %vm203, %v198, -inf
  %223 = vmax.xlane.f32.xlu0 %v222
  %v224 = vpop.xlane.xlu0 %223
  %v225 = vsel %vm203, %v201, -inf
  %226 = vmax.xlane.f32.xlu0 %v225
  %v227 = vpop.xlane.xlu0 %226
  %v228 = vsub.f32 %v180, %v206
  %v229 = vsub.f32 %v183, %v209
  %v230 = vsub.f32 %v186, %v212
  %v231 = vsub.f32 %v189, %v215
  %v232 = vsub.f32 %v192, %v218
  %v233 = vsub.f32 %v195, %v221
  %v234 = vsub.f32 %v198, %v224
  %v235 = vsub.f32 %v201, %v227
  %v236 = vmul.f32 %v228, 1.442695
  %v237 = vpow.pop %v236
  %v238 = vmul.f32 %v229, 1.442695
  %v239 = vpow.pop %v238
  %v240 = vmul.f32 %v230, 1.442695
  %v241 = vpow.pop %v240
  %v242 = vmul.f32 %v231, 1.442695
  %v243 = vpow.pop %v242
  %v244 = vmul.f32 %v232, 1.442695
  %v245 = vpow.pop %v244
  %v246 = vmul.f32 %v233, 1.442695
  %v247 = vpow.pop %v246
  %v248 = vmul.f32 %v234, 1.442695
  %v249 = vpow.pop %v248
  %v250 = vmul.f32 %v235, 1.442695
  %v251 = vpow.pop %v250
  %v252 = vsel %vm203, %v237, 0.0
  %253 = vadd.xlane.f32.xlu0 %v252
  %v254 = vpop.xlane.xlu0 %253
  %v255 = vsel %vm203, %v239, 0.0
  %256 = vadd.xlane.f32.xlu0 %v255
  %v257 = vpop.xlane.xlu0 %256
  %v258 = vsel %vm203, %v241, 0.0
  %259 = vadd.xlane.f32.xlu0 %v258
  %v260 = vpop.xlane.xlu0 %259
  %v261 = vsel %vm203, %v243, 0.0
  %262 = vadd.xlane.f32.xlu0 %v261
  %v263 = vpop.xlane.xlu0 %262
  %v264 = vsel %vm203, %v245, 0.0
  %265 = vadd.xlane.f32.xlu0 %v264
  %v266 = vpop.xlane.xlu0 %265
  %v267 = vsel %vm203, %v247, 0.0
  %268 = vadd.xlane.f32.xlu0 %v267
  %v269 = vpop.xlane.xlu0 %268
  %v270 = vsel %vm203, %v249, 0.0
  %271 = vadd.xlane.f32.xlu0 %v270
  %v272 = vpop.xlane.xlu0 %271
  %v273 = vsel %vm203, %v251, 0.0
  %274 = vadd.xlane.f32.xlu0 %v273
  %v275 = vpop.xlane.xlu0 %274
  %v276 = vrcp.pop %v254
  %v277 = vmul.f32 %v254, %v276
  %v278 = vsub.f32 1.0, %v277
  %v279 = vmul.f32 %v276, %v278
  %v280 = vadd.f32 %v276, %v279
  %vm281 = vweird.f32 %v254
  %vm282 = vweird.f32 %v276
  %vm283 = vmor %vm281, %vm282
  %v284 = vsel %vm283, %v276, %v280
  %v285 = vand.u32 2147483647, %v254
  %vm286 = vcmp.eq.f32.partialorder %v285, 8.507059e+37
  %v287 = vand.u32 %v254, 2147483648
  %v288 = vor.u32 1.1754944e-38, %v287
  %v289 = vsel %vm286, %v288, %v284
  %v290 = vmul.f32 %v237, %v289
  %v291 = vrcp.pop %v257
  %v292 = vmul.f32 %v257, %v291
  %v293 = vsub.f32 1.0, %v292
  %v294 = vmul.f32 %v291, %v293
  %v295 = vadd.f32 %v291, %v294
  %vm296 = vweird.f32 %v257
  %vm297 = vweird.f32 %v291
  %vm298 = vmor %vm296, %vm297
  %v299 = vsel %vm298, %v291, %v295
  %v300 = vand.u32 2147483647, %v257
  %vm301 = vcmp.eq.f32.partialorder %v300, 8.507059e+37
  %v302 = vand.u32 %v257, 2147483648
  %v303 = vor.u32 1.1754944e-38, %v302
  %v304 = vsel %vm301, %v303, %v299
  %v305 = vmul.f32 %v239, %v304
  %v306 = vrcp.pop %v260
  %v307 = vmul.f32 %v260, %v306
  %v308 = vsub.f32 1.0, %v307
  %v309 = vmul.f32 %v306, %v308
  %v310 = vadd.f32 %v306, %v309
  %vm311 = vweird.f32 %v260
  %vm312 = vweird.f32 %v306
  %vm313 = vmor %vm311, %vm312
  %v314 = vsel %vm313, %v306, %v310
  %v315 = vand.u32 2147483647, %v260
  %vm316 = vcmp.eq.f32.partialorder %v315, 8.507059e+37
  %v317 = vand.u32 %v260, 2147483648
  %v318 = vor.u32 1.1754944e-38, %v317
  %v319 = vsel %vm316, %v318, %v314
  %v320 = vmul.f32 %v241, %v319
  %v321 = vrcp.pop %v263
  %v322 = vmul.f32 %v263, %v321
  %v323 = vsub.f32 1.0, %v322
  %v324 = vmul.f32 %v321, %v323
  %v325 = vadd.f32 %v321, %v324
  %vm326 = vweird.f32 %v263
  %vm327 = vweird.f32 %v321
  %vm328 = vmor %vm326, %vm327
  %v329 = vsel %vm328, %v321, %v325
  %v330 = vand.u32 2147483647, %v263
  %vm331 = vcmp.eq.f32.partialorder %v330, 8.507059e+37
  %v332 = vand.u32 %v263, 2147483648
  %v333 = vor.u32 1.1754944e-38, %v332
  %v334 = vsel %vm331, %v333, %v329
  %v335 = vmul.f32 %v243, %v334
  %v336 = vrcp.pop %v266
  %v337 = vmul.f32 %v266, %v336
  %v338 = vsub.f32 1.0, %v337
  %v339 = vmul.f32 %v336, %v338
  %v340 = vadd.f32 %v336, %v339
  %vm341 = vweird.f32 %v266
  %vm342 = vweird.f32 %v336
  %vm343 = vmor %vm341, %vm342
  %v344 = vsel %vm343, %v336, %v340
  %v345 = vand.u32 2147483647, %v266
  %vm346 = vcmp.eq.f32.partialorder %v345, 8.507059e+37
  %v347 = vand.u32 %v266, 2147483648
  %v348 = vor.u32 1.1754944e-38, %v347
  %v349 = vsel %vm346, %v348, %v344
  %v350 = vmul.f32 %v245, %v349
  %v351 = vrcp.pop %v269
  %v352 = vmul.f32 %v269, %v351
  %v353 = vsub.f32 1.0, %v352
  %v354 = vmul.f32 %v351, %v353
  %v355 = vadd.f32 %v351, %v354
  %vm356 = vweird.f32 %v269
  %vm357 = vweird.f32 %v351
  %vm358 = vmor %vm356, %vm357
  %v359 = vsel %vm358, %v351, %v355
  %v360 = vand.u32 2147483647, %v269
  %vm361 = vcmp.eq.f32.partialorder %v360, 8.507059e+37
  %v362 = vand.u32 %v269, 2147483648
  %v363 = vor.u32 1.1754944e-38, %v362
  %v364 = vsel %vm361, %v363, %v359
  %v365 = vmul.f32 %v247, %v364
  %v366 = vrcp.pop %v272
  %v367 = vmul.f32 %v272, %v366
  %v368 = vsub.f32 1.0, %v367
  %v369 = vmul.f32 %v366, %v368
  %v370 = vadd.f32 %v366, %v369
  %vm371 = vweird.f32 %v272
  %vm372 = vweird.f32 %v366
  %vm373 = vmor %vm371, %vm372
  %v374 = vsel %vm373, %v366, %v370
  %v375 = vand.u32 2147483647, %v272
  %vm376 = vcmp.eq.f32.partialorder %v375, 8.507059e+37
  %v377 = vand.u32 %v272, 2147483648
  %v378 = vor.u32 1.1754944e-38, %v377
  %v379 = vsel %vm376, %v378, %v374
  %v380 = vmul.f32 %v249, %v379
  %v381 = vrcp.pop %v275
  %v382 = vmul.f32 %v275, %v381
  %v383 = vsub.f32 1.0, %v382
  %v384 = vmul.f32 %v381, %v383
  %v385 = vadd.f32 %v381, %v384
  %vm386 = vweird.f32 %v275
  %vm387 = vweird.f32 %v381
  %vm388 = vmor %vm386, %vm387
  %v389 = vsel %vm388, %v381, %v385
  %v390 = vand.u32 2147483647, %v275
  %vm391 = vcmp.eq.f32.partialorder %v390, 8.507059e+37
  %v392 = vand.u32 %v275, 2147483648
  %v393 = vor.u32 1.1754944e-38, %v392
  %v394 = vsel %vm391, %v393, %v389
  %v395 = vmul.f32 %v251, %v394
  %396 = vrot.lane.b32.xlu0 %v74, 96
  %v397 = vpop.permute.xlu0 %396
  %398 = vrot.lane.b32.xlu0 %v77, 96
  %v399 = vpop.permute.xlu0 %398
  %400 = vrot.lane.b32.xlu0 %v80, 96
  %v401 = vpop.permute.xlu0 %400
  %402 = vrot.lane.b32.xlu0 %v83, 96
  %v403 = vpop.permute.xlu0 %402
  %404 = vrot.lane.b32.xlu0 %v86, 96
  %v405 = vpop.permute.xlu0 %404
  %406 = vrot.lane.b32.xlu0 %v89, 96
  %v407 = vpop.permute.xlu0 %406
  %408 = vrot.lane.b32.xlu0 %v92, 96
  %v409 = vpop.permute.xlu0 %408
  %410 = vrot.lane.b32.xlu0 %v95, 96
  %v411 = vpop.permute.xlu0 %410
  %v412 = vsel %vm31, %v397, 0
  %v414 = vsel %vm31, %v399, 0
  %v416 = vsel %vm31, %v401, 0
  %v418 = vsel %vm31, %v403, 0
  %v420 = vsel %vm31, %v405, 0
  %v422 = vsel %vm31, %v407, 0
  %v424 = vsel %vm31, %v409, 0
  %v426 = vsel %vm31, %v411, 0
  %428 = vmatpush.xpose.msra.mxu0 0.0
  %429 = vmatpush.xpose.msra.mxu0 0.0
  %430 = vmatpush.xpose.msra.mxu0 0.0
  %431 = vmatpush.xpose.msra.mxu0 0.0
  %432 = vmatpush.xpose.msra.mxu0 0.0
  %433 = vmatpush.xpose.msra.mxu0 0.0
  %434 = vmatpush.xpose.msra.mxu0 0.0
  %435 = vmatpush.xpose.msra.mxu0 0.0
  %436 = vmatpush.xpose.msra.mxu0 %v54
  %437 = vmatpush.xpose.msra.mxu0 %v51
  %438 = vmatpush.xpose.msra.mxu0 %v48
  %439 = vmatpush.xpose.msra.mxu0 %v45
  %440 = vmatpush.xpose.msra.mxu0 %v42
  %441 = vmatpush.xpose.msra.mxu0 %v39
  %442 = vmatpush.xpose.msra.mxu0 %v36
  %443 = vmatpush.xpose.msra.mxu0 %v33
  %444 = vmatmul.f32.gmra.mxu0 %v412
  %v445 = vpop.f32.mrf.mxu0
  %v446 = vadd.f32 0.0, %v445
  %447 = vmatmul.f32.gmra.mxu0 %v414
  %v448 = vpop.f32.mrf.mxu0
  %v449 = vadd.f32 0.0, %v448
  %450 = vmatmul.f32.gmra.mxu0 %v416
  %v451 = vpop.f32.mrf.mxu0
  %v452 = vadd.f32 0.0, %v451
  %453 = vmatmul.f32.gmra.mxu0 %v418
  %v454 = vpop.f32.mrf.mxu0
  %v455 = vadd.f32 0.0, %v454
  %456 = vmatmul.f32.gmra.mxu0 %v420
  %v457 = vpop.f32.mrf.mxu0
  %v458 = vadd.f32 0.0, %v457
  %459 = vmatmul.f32.gmra.mxu0 %v422
  %v460 = vpop.f32.mrf.mxu0
  %v461 = vadd.f32 0.0, %v460
  %462 = vmatmul.f32.gmra.mxu0 %v424
  %v463 = vpop.f32.mrf.mxu0
  %v464 = vadd.f32 0.0, %v463
  %465 = vmatmul.f32.gmra.mxu0 %v426
  %v466 = vpop.f32.mrf.mxu0
  %v467 = vadd.f32 0.0, %v466
  %468 = vdwg.mxu0
  %v469 = vsel %vm203, %v446, -inf
  %470 = vmax.xlane.f32.xlu0 %v469
  %v471 = vpop.xlane.xlu0 %470
  %v472 = vsel %vm203, %v449, -inf
  %473 = vmax.xlane.f32.xlu0 %v472
  %v474 = vpop.xlane.xlu0 %473
  %v475 = vsel %vm203, %v452, -inf
  %476 = vmax.xlane.f32.xlu0 %v475
  %v477 = vpop.xlane.xlu0 %476
  %v478 = vsel %vm203, %v455, -inf
  %479 = vmax.xlane.f32.xlu0 %v478
  %v480 = vpop.xlane.xlu0 %479
  %v481 = vsel %vm203, %v458, -inf
  %482 = vmax.xlane.f32.xlu0 %v481
  %v483 = vpop.xlane.xlu0 %482
  %v484 = vsel %vm203, %v461, -inf
  %485 = vmax.xlane.f32.xlu0 %v484
  %v486 = vpop.xlane.xlu0 %485
  %v487 = vsel %vm203, %v464, -inf
  %488 = vmax.xlane.f32.xlu0 %v487
  %v489 = vpop.xlane.xlu0 %488
  %v490 = vsel %vm203, %v467, -inf
  %491 = vmax.xlane.f32.xlu0 %v490
  %v492 = vpop.xlane.xlu0 %491
  %v493 = vsub.f32 %v446, %v471
  %v494 = vsub.f32 %v449, %v474
  %v495 = vsub.f32 %v452, %v477
  %v496 = vsub.f32 %v455, %v480
  %v497 = vsub.f32 %v458, %v483
  %v498 = vsub.f32 %v461, %v486
  %v499 = vsub.f32 %v464, %v489
  %v500 = vsub.f32 %v467, %v492
  %v501 = vmul.f32 %v493, 1.442695
  %v502 = vpow.pop %v501
  %v503 = vmul.f32 %v494, 1.442695
  %v504 = vpow.pop %v503
  %v505 = vmul.f32 %v495, 1.442695
  %v506 = vpow.pop %v505
  %v507 = vmul.f32 %v496, 1.442695
  %v508 = vpow.pop %v507
  %v509 = vmul.f32 %v497, 1.442695
  %v510 = vpow.pop %v509
  %v511 = vmul.f32 %v498, 1.442695
  %v512 = vpow.pop %v511
  %v513 = vmul.f32 %v499, 1.442695
  %v514 = vpow.pop %v513
  %v515 = vmul.f32 %v500, 1.442695
  %v516 = vpow.pop %v515
  %v517 = vsel %vm203, %v502, 0.0
  %518 = vadd.xlane.f32.xlu0 %v517
  %v519 = vpop.xlane.xlu0 %518
  %v520 = vsel %vm203, %v504, 0.0
  %521 = vadd.xlane.f32.xlu0 %v520
  %v522 = vpop.xlane.xlu0 %521
  %v523 = vsel %vm203, %v506, 0.0
  %524 = vadd.xlane.f32.xlu0 %v523
  %v525 = vpop.xlane.xlu0 %524
  %v526 = vsel %vm203, %v508, 0.0
  %527 = vadd.xlane.f32.xlu0 %v526
  %v528 = vpop.xlane.xlu0 %527
  %v529 = vsel %vm203, %v510, 0.0
  %530 = vadd.xlane.f32.xlu0 %v529
  %v531 = vpop.xlane.xlu0 %530
  %v532 = vsel %vm203, %v512, 0.0
  %533 = vadd.xlane.f32.xlu0 %v532
  %v534 = vpop.xlane.xlu0 %533
  %v535 = vsel %vm203, %v514, 0.0
  %536 = vadd.xlane.f32.xlu0 %v535
  %v537 = vpop.xlane.xlu0 %536
  %v538 = vsel %vm203, %v516, 0.0
  %539 = vadd.xlane.f32.xlu0 %v538
  %v540 = vpop.xlane.xlu0 %539
  %v541 = vrcp.pop %v519
  %v542 = vmul.f32 %v519, %v541
  %v543 = vsub.f32 1.0, %v542
  %v544 = vmul.f32 %v541, %v543
  %v545 = vadd.f32 %v541, %v544
  %vm546 = vweird.f32 %v519
  %vm547 = vweird.f32 %v541
  %vm548 = vmor %vm546, %vm547
  %v549 = vsel %vm548, %v541, %v545
  %v550 = vand.u32 2147483647, %v519
  %vm551 = vcmp.eq.f32.partialorder %v550, 8.507059e+37
  %v552 = vand.u32 %v519, 2147483648
  %v553 = vor.u32 1.1754944e-38, %v552
  %v554 = vsel %vm551, %v553, %v549
  %v555 = vmul.f32 %v502, %v554
  %v556 = vrcp.pop %v522
  %v557 = vmul.f32 %v522, %v556
  %v558 = vsub.f32 1.0, %v557
  %v559 = vmul.f32 %v556, %v558
  %v560 = vadd.f32 %v556, %v559
  %vm561 = vweird.f32 %v522
  %vm562 = vweird.f32 %v556
  %vm563 = vmor %vm561, %vm562
  %v564 = vsel %vm563, %v556, %v560
  %v565 = vand.u32 2147483647, %v522
  %vm566 = vcmp.eq.f32.partialorder %v565, 8.507059e+37
  %v567 = vand.u32 %v522, 2147483648
  %v568 = vor.u32 1.1754944e-38, %v567
  %v569 = vsel %vm566, %v568, %v564
  %v570 = vmul.f32 %v504, %v569
  %v571 = vrcp.pop %v525
  %v572 = vmul.f32 %v525, %v571
  %v573 = vsub.f32 1.0, %v572
  %v574 = vmul.f32 %v571, %v573
  %v575 = vadd.f32 %v571, %v574
  %vm576 = vweird.f32 %v525
  %vm577 = vweird.f32 %v571
  %vm578 = vmor %vm576, %vm577
  %v579 = vsel %vm578, %v571, %v575
  %v580 = vand.u32 2147483647, %v525
  %vm581 = vcmp.eq.f32.partialorder %v580, 8.507059e+37
  %v582 = vand.u32 %v525, 2147483648
  %v583 = vor.u32 1.1754944e-38, %v582
  %v584 = vsel %vm581, %v583, %v579
  %v585 = vmul.f32 %v506, %v584
  %v586 = vrcp.pop %v528
  %v587 = vmul.f32 %v528, %v586
  %v588 = vsub.f32 1.0, %v587
  %v589 = vmul.f32 %v586, %v588
  %v590 = vadd.f32 %v586, %v589
  %vm591 = vweird.f32 %v528
  %vm592 = vweird.f32 %v586
  %vm593 = vmor %vm591, %vm592
  %v594 = vsel %vm593, %v586, %v590
  %v595 = vand.u32 2147483647, %v528
  %vm596 = vcmp.eq.f32.partialorder %v595, 8.507059e+37
  %v597 = vand.u32 %v528, 2147483648
  %v598 = vor.u32 1.1754944e-38, %v597
  %v599 = vsel %vm596, %v598, %v594
  %v600 = vmul.f32 %v508, %v599
  %v601 = vrcp.pop %v531
  %v602 = vmul.f32 %v531, %v601
  %v603 = vsub.f32 1.0, %v602
  %v604 = vmul.f32 %v601, %v603
  %v605 = vadd.f32 %v601, %v604
  %vm606 = vweird.f32 %v531
  %vm607 = vweird.f32 %v601
  %vm608 = vmor %vm606, %vm607
  %v609 = vsel %vm608, %v601, %v605
  %v610 = vand.u32 2147483647, %v531
  %vm611 = vcmp.eq.f32.partialorder %v610, 8.507059e+37
  %v612 = vand.u32 %v531, 2147483648
  %v613 = vor.u32 1.1754944e-38, %v612
  %v614 = vsel %vm611, %v613, %v609
  %v615 = vmul.f32 %v510, %v614
  %v616 = vrcp.pop %v534
  %v617 = vmul.f32 %v534, %v616
  %v618 = vsub.f32 1.0, %v617
  %v619 = vmul.f32 %v616, %v618
  %v620 = vadd.f32 %v616, %v619
  %vm621 = vweird.f32 %v534
  %vm622 = vweird.f32 %v616
  %vm623 = vmor %vm621, %vm622
  %v624 = vsel %vm623, %v616, %v620
  %v625 = vand.u32 2147483647, %v534
  %vm626 = vcmp.eq.f32.partialorder %v625, 8.507059e+37
  %v627 = vand.u32 %v534, 2147483648
  %v628 = vor.u32 1.1754944e-38, %v627
  %v629 = vsel %vm626, %v628, %v624
  %v630 = vmul.f32 %v512, %v629
  %v631 = vrcp.pop %v537
  %v632 = vmul.f32 %v537, %v631
  %v633 = vsub.f32 1.0, %v632
  %v634 = vmul.f32 %v631, %v633
  %v635 = vadd.f32 %v631, %v634
  %vm636 = vweird.f32 %v537
  %vm637 = vweird.f32 %v631
  %vm638 = vmor %vm636, %vm637
  %v639 = vsel %vm638, %v631, %v635
  %v640 = vand.u32 2147483647, %v537
  %vm641 = vcmp.eq.f32.partialorder %v640, 8.507059e+37
  %v642 = vand.u32 %v537, 2147483648
  %v643 = vor.u32 1.1754944e-38, %v642
  %v644 = vsel %vm641, %v643, %v639
  %v645 = vmul.f32 %v514, %v644
  %v646 = vrcp.pop %v540
  %v647 = vmul.f32 %v540, %v646
  %v648 = vsub.f32 1.0, %v647
  %v649 = vmul.f32 %v646, %v648
  %v650 = vadd.f32 %v646, %v649
  %vm651 = vweird.f32 %v540
  %vm652 = vweird.f32 %v646
  %vm653 = vmor %vm651, %vm652
  %v654 = vsel %vm653, %v646, %v650
  %v655 = vand.u32 2147483647, %v540
  %vm656 = vcmp.eq.f32.partialorder %v655, 8.507059e+37
  %v657 = vand.u32 %v540, 2147483648
  %v658 = vor.u32 1.1754944e-38, %v657
  %v659 = vsel %vm656, %v658, %v654
  %v660 = vmul.f32 %v516, %v659
  %669 = vrot.lane.b32.xlu0 %v115, 96
  %v670 = vpop.permute.xlu0 %669
  %671 = vrot.lane.b32.xlu0 %v118, 96
  %v672 = vpop.permute.xlu0 %671
  %673 = vrot.lane.b32.xlu0 %v121, 96
  %v674 = vpop.permute.xlu0 %673
  %675 = vrot.lane.b32.xlu0 %v124, 96
  %v676 = vpop.permute.xlu0 %675
  %677 = vrot.lane.b32.xlu0 %v127, 96
  %v678 = vpop.permute.xlu0 %677
  %679 = vrot.lane.b32.xlu0 %v130, 96
  %v680 = vpop.permute.xlu0 %679
  %681 = vrot.lane.b32.xlu0 %v133, 96
  %v682 = vpop.permute.xlu0 %681
  %683 = vrot.lane.b32.xlu0 %v136, 96
  %v684 = vpop.permute.xlu0 %683
  %v694 = vsel %vm203, %v555, 0
  %v697 = vsel %vm203, %v570, 0
  %v700 = vsel %vm203, %v585, 0
  %v703 = vsel %vm203, %v600, 0
  %v706 = vsel %vm203, %v615, 0
  %v709 = vsel %vm203, %v630, 0
  %v712 = vsel %vm203, %v645, 0
  %v715 = vsel %vm203, %v660, 0
  %717 = vmatpush.msra.mxu0 0.0
  %718 = vmatpush.msra.mxu0 0.0
  %719 = vmatpush.msra.mxu0 0.0
  %720 = vmatpush.msra.mxu0 0.0
  %721 = vmatpush.msra.mxu0 0.0
  %722 = vmatpush.msra.mxu0 0.0
  %723 = vmatpush.msra.mxu0 0.0
  %724 = vmatpush.msra.mxu0 0.0
  %725 = vmatpush.msra.mxu0 %v684
  %726 = vmatpush.msra.mxu0 %v682
  %727 = vmatpush.msra.mxu0 %v680
  %728 = vmatpush.msra.mxu0 %v678
  %729 = vmatpush.msra.mxu0 %v676
  %730 = vmatpush.msra.mxu0 %v674
  %731 = vmatpush.msra.mxu0 %v672
  %732 = vmatpush.msra.mxu0 %v670
  %733 = vmatmul.f32.gmra.mxu0 %v694
  %v734 = vpop.f32.mrf.mxu0
  %v735 = vadd.f32 0.0, %v734
  %736 = vmatmul.f32.gmra.mxu0 %v697
  %v737 = vpop.f32.mrf.mxu0
  %v738 = vadd.f32 0.0, %v737
  %739 = vmatmul.f32.gmra.mxu0 %v700
  %v740 = vpop.f32.mrf.mxu0
  %v741 = vadd.f32 0.0, %v740
  %742 = vmatmul.f32.gmra.mxu0 %v703
  %v743 = vpop.f32.mrf.mxu0
  %v744 = vadd.f32 0.0, %v743
  %745 = vmatmul.f32.gmra.mxu0 %v706
  %v746 = vpop.f32.mrf.mxu0
  %v747 = vadd.f32 0.0, %v746
  %748 = vmatmul.f32.gmra.mxu0 %v709
  %v749 = vpop.f32.mrf.mxu0
  %v750 = vadd.f32 0.0, %v749
  %751 = vmatmul.f32.gmra.mxu0 %v712
  %v752 = vpop.f32.mrf.mxu0
  %v753 = vadd.f32 0.0, %v752
  %754 = vmatmul.f32.gmra.mxu0 %v715
  %v755 = vpop.f32.mrf.mxu0
  %v756 = vadd.f32 0.0, %v755
  %757 = vdwg.mxu0
  %v759 = vsel %vm203, %v290, 0
  %v762 = vsel %vm203, %v305, 0
  %v765 = vsel %vm203, %v320, 0
  %v768 = vsel %vm203, %v335, 0
  %v771 = vsel %vm203, %v350, 0
  %v774 = vsel %vm203, %v365, 0
  %v777 = vsel %vm203, %v380, 0
  %v780 = vsel %vm203, %v395, 0
  %782 = vmatpush.msra.mxu0 0.0
  %783 = vmatpush.msra.mxu0 0.0
  %784 = vmatpush.msra.mxu0 0.0
  %785 = vmatpush.msra.mxu0 0.0
  %786 = vmatpush.msra.mxu0 0.0
  %787 = vmatpush.msra.mxu0 0.0
  %788 = vmatpush.msra.mxu0 0.0
  %789 = vmatpush.msra.mxu0 0.0
  %790 = vmatpush.msra.mxu0 %v136
  %791 = vmatpush.msra.mxu0 %v133
  %792 = vmatpush.msra.mxu0 %v130
  %793 = vmatpush.msra.mxu0 %v127
  %794 = vmatpush.msra.mxu0 %v124
  %795 = vmatpush.msra.mxu0 %v121
  %796 = vmatpush.msra.mxu0 %v118
  %797 = vmatpush.msra.mxu0 %v115
  %798 = vmatmul.f32.gmra.mxu0 %v759
  %v799 = vpop.f32.mrf.mxu0
  %v800 = vadd.f32 %v735, %v799
  %801 = vmatmul.f32.gmra.mxu0 %v762
  %v802 = vpop.f32.mrf.mxu0
  %v803 = vadd.f32 %v738, %v802
  %804 = vmatmul.f32.gmra.mxu0 %v765
  %v805 = vpop.f32.mrf.mxu0
  %v806 = vadd.f32 %v741, %v805
  %807 = vmatmul.f32.gmra.mxu0 %v768
  %v808 = vpop.f32.mrf.mxu0
  %v809 = vadd.f32 %v744, %v808
  %810 = vmatmul.f32.gmra.mxu0 %v771
  %v811 = vpop.f32.mrf.mxu0
  %v812 = vadd.f32 %v747, %v811
  %813 = vmatmul.f32.gmra.mxu0 %v774
  %v814 = vpop.f32.mrf.mxu0
  %v815 = vadd.f32 %v750, %v814
  %816 = vmatmul.f32.gmra.mxu0 %v777
  %v817 = vpop.f32.mrf.mxu0
  %v818 = vadd.f32 %v753, %v817
  %819 = vmatmul.f32.gmra.mxu0 %v780
  %v820 = vpop.f32.mrf.mxu0
  %v821 = vadd.f32 %v756, %v820
  %822 = vdwg.mxu0
  %823 = vrot.lane.b32.xlu0 %v74, 64
  %v824 = vpop.permute.xlu0 %823
  %825 = vrot.lane.b32.xlu0 %v77, 64
  %v826 = vpop.permute.xlu0 %825
  %827 = vrot.lane.b32.xlu0 %v80, 64
  %v828 = vpop.permute.xlu0 %827
  %829 = vrot.lane.b32.xlu0 %v83, 64
  %v830 = vpop.permute.xlu0 %829
  %831 = vrot.lane.b32.xlu0 %v86, 64
  %v832 = vpop.permute.xlu0 %831
  %833 = vrot.lane.b32.xlu0 %v89, 64
  %v834 = vpop.permute.xlu0 %833
  %835 = vrot.lane.b32.xlu0 %v92, 64
  %v836 = vpop.permute.xlu0 %835
  %837 = vrot.lane.b32.xlu0 %v95, 64
  %v838 = vpop.permute.xlu0 %837
  %v839 = vsel %vm31, %v824, 0
  %v841 = vsel %vm31, %v826, 0
  %v843 = vsel %vm31, %v828, 0
  %v845 = vsel %vm31, %v830, 0
  %v847 = vsel %vm31, %v832, 0
  %v849 = vsel %vm31, %v834, 0
  %v851 = vsel %vm31, %v836, 0
  %v853 = vsel %vm31, %v838, 0
  %855 = vmatpush.xpose.msra.mxu0 0.0
  %856 = vmatpush.xpose.msra.mxu0 0.0
  %857 = vmatpush.xpose.msra.mxu0 0.0
  %858 = vmatpush.xpose.msra.mxu0 0.0
  %859 = vmatpush.xpose.msra.mxu0 0.0
  %860 = vmatpush.xpose.msra.mxu0 0.0
  %861 = vmatpush.xpose.msra.mxu0 0.0
  %862 = vmatpush.xpose.msra.mxu0 0.0
  %863 = vmatpush.xpose.msra.mxu0 %v54
  %864 = vmatpush.xpose.msra.mxu0 %v51
  %865 = vmatpush.xpose.msra.mxu0 %v48
  %866 = vmatpush.xpose.msra.mxu0 %v45
  %867 = vmatpush.xpose.msra.mxu0 %v42
  %868 = vmatpush.xpose.msra.mxu0 %v39
  %869 = vmatpush.xpose.msra.mxu0 %v36
  %870 = vmatpush.xpose.msra.mxu0 %v33
  %871 = vmatmul.f32.gmra.mxu0 %v839
  %v872 = vpop.f32.mrf.mxu0
  %v873 = vadd.f32 0.0, %v872
  %874 = vmatmul.f32.gmra.mxu0 %v841
  %v875 = vpop.f32.mrf.mxu0
  %v876 = vadd.f32 0.0, %v875
  %877 = vmatmul.f32.gmra.mxu0 %v843
  %v878 = vpop.f32.mrf.mxu0
  %v879 = vadd.f32 0.0, %v878
  %880 = vmatmul.f32.gmra.mxu0 %v845
  %v881 = vpop.f32.mrf.mxu0
  %v882 = vadd.f32 0.0, %v881
  %883 = vmatmul.f32.gmra.mxu0 %v847
  %v884 = vpop.f32.mrf.mxu0
  %v885 = vadd.f32 0.0, %v884
  %886 = vmatmul.f32.gmra.mxu0 %v849
  %v887 = vpop.f32.mrf.mxu0
  %v888 = vadd.f32 0.0, %v887
  %889 = vmatmul.f32.gmra.mxu0 %v851
  %v890 = vpop.f32.mrf.mxu0
  %v891 = vadd.f32 0.0, %v890
  %892 = vmatmul.f32.gmra.mxu0 %v853
  %v893 = vpop.f32.mrf.mxu0
  %v894 = vadd.f32 0.0, %v893
  %895 = vdwg.mxu0
  %v896 = vsel %vm203, %v873, -inf
  %897 = vmax.xlane.f32.xlu0 %v896
  %v898 = vpop.xlane.xlu0 %897
  %v899 = vsel %vm203, %v876, -inf
  %900 = vmax.xlane.f32.xlu0 %v899
  %v901 = vpop.xlane.xlu0 %900
  %v902 = vsel %vm203, %v879, -inf
  %903 = vmax.xlane.f32.xlu0 %v902
  %v904 = vpop.xlane.xlu0 %903
  %v905 = vsel %vm203, %v882, -inf
  %906 = vmax.xlane.f32.xlu0 %v905
  %v907 = vpop.xlane.xlu0 %906
  %v908 = vsel %vm203, %v885, -inf
  %909 = vmax.xlane.f32.xlu0 %v908
  %v910 = vpop.xlane.xlu0 %909
  %v911 = vsel %vm203, %v888, -inf
  %912 = vmax.xlane.f32.xlu0 %v911
  %v913 = vpop.xlane.xlu0 %912
  %v914 = vsel %vm203, %v891, -inf
  %915 = vmax.xlane.f32.xlu0 %v914
  %v916 = vpop.xlane.xlu0 %915
  %v917 = vsel %vm203, %v894, -inf
  %918 = vmax.xlane.f32.xlu0 %v917
  %v919 = vpop.xlane.xlu0 %918
  %v920 = vsub.f32 %v873, %v898
  %v921 = vsub.f32 %v876, %v901
  %v922 = vsub.f32 %v879, %v904
  %v923 = vsub.f32 %v882, %v907
  %v924 = vsub.f32 %v885, %v910
  %v925 = vsub.f32 %v888, %v913
  %v926 = vsub.f32 %v891, %v916
  %v927 = vsub.f32 %v894, %v919
  %v928 = vmul.f32 %v920, 1.442695
  %v929 = vpow.pop %v928
  %v930 = vmul.f32 %v921, 1.442695
  %v931 = vpow.pop %v930
  %v932 = vmul.f32 %v922, 1.442695
  %v933 = vpow.pop %v932
  %v934 = vmul.f32 %v923, 1.442695
  %v935 = vpow.pop %v934
  %v936 = vmul.f32 %v924, 1.442695
  %v937 = vpow.pop %v936
  %v938 = vmul.f32 %v925, 1.442695
  %v939 = vpow.pop %v938
  %v940 = vmul.f32 %v926, 1.442695
  %v941 = vpow.pop %v940
  %v942 = vmul.f32 %v927, 1.442695
  %v943 = vpow.pop %v942
  %v944 = vsel %vm203, %v929, 0.0
  %945 = vadd.xlane.f32.xlu0 %v944
  %v946 = vpop.xlane.xlu0 %945
  %v947 = vsel %vm203, %v931, 0.0
  %948 = vadd.xlane.f32.xlu0 %v947
  %v949 = vpop.xlane.xlu0 %948
  %v950 = vsel %vm203, %v933, 0.0
  %951 = vadd.xlane.f32.xlu0 %v950
  %v952 = vpop.xlane.xlu0 %951
  %v953 = vsel %vm203, %v935, 0.0
  %954 = vadd.xlane.f32.xlu0 %v953
  %v955 = vpop.xlane.xlu0 %954
  %v956 = vsel %vm203, %v937, 0.0
  %957 = vadd.xlane.f32.xlu0 %v956
  %v958 = vpop.xlane.xlu0 %957
  %v959 = vsel %vm203, %v939, 0.0
  %960 = vadd.xlane.f32.xlu0 %v959
  %v961 = vpop.xlane.xlu0 %960
  %v962 = vsel %vm203, %v941, 0.0
  %963 = vadd.xlane.f32.xlu0 %v962
  %v964 = vpop.xlane.xlu0 %963
  %v965 = vsel %vm203, %v943, 0.0
  %966 = vadd.xlane.f32.xlu0 %v965
  %v967 = vpop.xlane.xlu0 %966
  %v968 = vrcp.pop %v946
  %v969 = vmul.f32 %v946, %v968
  %v970 = vsub.f32 1.0, %v969
  %v971 = vmul.f32 %v968, %v970
  %v972 = vadd.f32 %v968, %v971
  %vm973 = vweird.f32 %v946
  %vm974 = vweird.f32 %v968
  %vm975 = vmor %vm973, %vm974
  %v976 = vsel %vm975, %v968, %v972
  %v977 = vand.u32 2147483647, %v946
  %vm978 = vcmp.eq.f32.partialorder %v977, 8.507059e+37
  %v979 = vand.u32 %v946, 2147483648
  %v980 = vor.u32 1.1754944e-38, %v979
  %v981 = vsel %vm978, %v980, %v976
  %v982 = vmul.f32 %v929, %v981
  %v983 = vrcp.pop %v949
  %v984 = vmul.f32 %v949, %v983
  %v985 = vsub.f32 1.0, %v984
  %v986 = vmul.f32 %v983, %v985
  %v987 = vadd.f32 %v983, %v986
  %vm988 = vweird.f32 %v949
  %vm989 = vweird.f32 %v983
  %vm990 = vmor %vm988, %vm989
  %v991 = vsel %vm990, %v983, %v987
  %v992 = vand.u32 2147483647, %v949
  %vm993 = vcmp.eq.f32.partialorder %v992, 8.507059e+37
  %v994 = vand.u32 %v949, 2147483648
  %v995 = vor.u32 1.1754944e-38, %v994
  %v996 = vsel %vm993, %v995, %v991
  %v997 = vmul.f32 %v931, %v996
  %v998 = vrcp.pop %v952
  %v999 = vmul.f32 %v952, %v998
  %v1000 = vsub.f32 1.0, %v999
  %v1001 = vmul.f32 %v998, %v1000
  %v1002 = vadd.f32 %v998, %v1001
  %vm1003 = vweird.f32 %v952
  %vm1004 = vweird.f32 %v998
  %vm1005 = vmor %vm1003, %vm1004
  %v1006 = vsel %vm1005, %v998, %v1002
  %v1007 = vand.u32 2147483647, %v952
  %vm1008 = vcmp.eq.f32.partialorder %v1007, 8.507059e+37
  %v1009 = vand.u32 %v952, 2147483648
  %v1010 = vor.u32 1.1754944e-38, %v1009
  %v1011 = vsel %vm1008, %v1010, %v1006
  %v1012 = vmul.f32 %v933, %v1011
  %v1013 = vrcp.pop %v955
  %v1014 = vmul.f32 %v955, %v1013
  %v1015 = vsub.f32 1.0, %v1014
  %v1016 = vmul.f32 %v1013, %v1015
  %v1017 = vadd.f32 %v1013, %v1016
  %vm1018 = vweird.f32 %v955
  %vm1019 = vweird.f32 %v1013
  %vm1020 = vmor %vm1018, %vm1019
  %v1021 = vsel %vm1020, %v1013, %v1017
  %v1022 = vand.u32 2147483647, %v955
  %vm1023 = vcmp.eq.f32.partialorder %v1022, 8.507059e+37
  %v1024 = vand.u32 %v955, 2147483648
  %v1025 = vor.u32 1.1754944e-38, %v1024
  %v1026 = vsel %vm1023, %v1025, %v1021
  %v1027 = vmul.f32 %v935, %v1026
  %v1028 = vrcp.pop %v958
  %v1029 = vmul.f32 %v958, %v1028
  %v1030 = vsub.f32 1.0, %v1029
  %v1031 = vmul.f32 %v1028, %v1030
  %v1032 = vadd.f32 %v1028, %v1031
  %vm1033 = vweird.f32 %v958
  %vm1034 = vweird.f32 %v1028
  %vm1035 = vmor %vm1033, %vm1034
  %v1036 = vsel %vm1035, %v1028, %v1032
  %v1037 = vand.u32 2147483647, %v958
  %vm1038 = vcmp.eq.f32.partialorder %v1037, 8.507059e+37
  %v1039 = vand.u32 %v958, 2147483648
  %v1040 = vor.u32 1.1754944e-38, %v1039
  %v1041 = vsel %vm1038, %v1040, %v1036
  %v1042 = vmul.f32 %v937, %v1041
  %v1043 = vrcp.pop %v961
  %v1044 = vmul.f32 %v961, %v1043
  %v1045 = vsub.f32 1.0, %v1044
  %v1046 = vmul.f32 %v1043, %v1045
  %v1047 = vadd.f32 %v1043, %v1046
  %vm1048 = vweird.f32 %v961
  %vm1049 = vweird.f32 %v1043
  %vm1050 = vmor %vm1048, %vm1049
  %v1051 = vsel %vm1050, %v1043, %v1047
  %v1052 = vand.u32 2147483647, %v961
  %vm1053 = vcmp.eq.f32.partialorder %v1052, 8.507059e+37
  %v1054 = vand.u32 %v961, 2147483648
  %v1055 = vor.u32 1.1754944e-38, %v1054
  %v1056 = vsel %vm1053, %v1055, %v1051
  %v1057 = vmul.f32 %v939, %v1056
  %v1058 = vrcp.pop %v964
  %v1059 = vmul.f32 %v964, %v1058
  %v1060 = vsub.f32 1.0, %v1059
  %v1061 = vmul.f32 %v1058, %v1060
  %v1062 = vadd.f32 %v1058, %v1061
  %vm1063 = vweird.f32 %v964
  %vm1064 = vweird.f32 %v1058
  %vm1065 = vmor %vm1063, %vm1064
  %v1066 = vsel %vm1065, %v1058, %v1062
  %v1067 = vand.u32 2147483647, %v964
  %vm1068 = vcmp.eq.f32.partialorder %v1067, 8.507059e+37
  %v1069 = vand.u32 %v964, 2147483648
  %v1070 = vor.u32 1.1754944e-38, %v1069
  %v1071 = vsel %vm1068, %v1070, %v1066
  %v1072 = vmul.f32 %v941, %v1071
  %v1073 = vrcp.pop %v967
  %v1074 = vmul.f32 %v967, %v1073
  %v1075 = vsub.f32 1.0, %v1074
  %v1076 = vmul.f32 %v1073, %v1075
  %v1077 = vadd.f32 %v1073, %v1076
  %vm1078 = vweird.f32 %v967
  %vm1079 = vweird.f32 %v1073
  %vm1080 = vmor %vm1078, %vm1079
  %v1081 = vsel %vm1080, %v1073, %v1077
  %v1082 = vand.u32 2147483647, %v967
  %vm1083 = vcmp.eq.f32.partialorder %v1082, 8.507059e+37
  %v1084 = vand.u32 %v967, 2147483648
  %v1085 = vor.u32 1.1754944e-38, %v1084
  %v1086 = vsel %vm1083, %v1085, %v1081
  %v1087 = vmul.f32 %v943, %v1086
  %1088 = vrot.lane.b32.xlu0 %v115, 64
  %v1089 = vpop.permute.xlu0 %1088
  %1090 = vrot.lane.b32.xlu0 %v118, 64
  %v1091 = vpop.permute.xlu0 %1090
  %1092 = vrot.lane.b32.xlu0 %v121, 64
  %v1093 = vpop.permute.xlu0 %1092
  %1094 = vrot.lane.b32.xlu0 %v124, 64
  %v1095 = vpop.permute.xlu0 %1094
  %1096 = vrot.lane.b32.xlu0 %v127, 64
  %v1097 = vpop.permute.xlu0 %1096
  %1098 = vrot.lane.b32.xlu0 %v130, 64
  %v1099 = vpop.permute.xlu0 %1098
  %1100 = vrot.lane.b32.xlu0 %v133, 64
  %v1101 = vpop.permute.xlu0 %1100
  %1102 = vrot.lane.b32.xlu0 %v136, 64
  %v1103 = vpop.permute.xlu0 %1102
  %v1113 = vsel %vm203, %v982, 0
  %v1116 = vsel %vm203, %v997, 0
  %v1119 = vsel %vm203, %v1012, 0
  %v1122 = vsel %vm203, %v1027, 0
  %v1125 = vsel %vm203, %v1042, 0
  %v1128 = vsel %vm203, %v1057, 0
  %v1131 = vsel %vm203, %v1072, 0
  %v1134 = vsel %vm203, %v1087, 0
  %1136 = vmatpush.msra.mxu0 0.0
  %1137 = vmatpush.msra.mxu0 0.0
  %1138 = vmatpush.msra.mxu0 0.0
  %1139 = vmatpush.msra.mxu0 0.0
  %1140 = vmatpush.msra.mxu0 0.0
  %1141 = vmatpush.msra.mxu0 0.0
  %1142 = vmatpush.msra.mxu0 0.0
  %1143 = vmatpush.msra.mxu0 0.0
  %1144 = vmatpush.msra.mxu0 %v1103
  %1145 = vmatpush.msra.mxu0 %v1101
  %1146 = vmatpush.msra.mxu0 %v1099
  %1147 = vmatpush.msra.mxu0 %v1097
  %1148 = vmatpush.msra.mxu0 %v1095
  %1149 = vmatpush.msra.mxu0 %v1093
  %1150 = vmatpush.msra.mxu0 %v1091
  %1151 = vmatpush.msra.mxu0 %v1089
  %1152 = vmatmul.f32.gmra.mxu0 %v1113
  %v1153 = vpop.f32.mrf.mxu0
  %v1154 = vadd.f32 0.0, %v1153
  %1155 = vmatmul.f32.gmra.mxu0 %v1116
  %v1156 = vpop.f32.mrf.mxu0
  %v1157 = vadd.f32 0.0, %v1156
  %1158 = vmatmul.f32.gmra.mxu0 %v1119
  %v1159 = vpop.f32.mrf.mxu0
  %v1160 = vadd.f32 0.0, %v1159
  %1161 = vmatmul.f32.gmra.mxu0 %v1122
  %v1162 = vpop.f32.mrf.mxu0
  %v1163 = vadd.f32 0.0, %v1162
  %1164 = vmatmul.f32.gmra.mxu0 %v1125
  %v1165 = vpop.f32.mrf.mxu0
  %v1166 = vadd.f32 0.0, %v1165
  %1167 = vmatmul.f32.gmra.mxu0 %v1128
  %v1168 = vpop.f32.mrf.mxu0
  %v1169 = vadd.f32 0.0, %v1168
  %1170 = vmatmul.f32.gmra.mxu0 %v1131
  %v1171 = vpop.f32.mrf.mxu0
  %v1172 = vadd.f32 0.0, %v1171
  %1173 = vmatmul.f32.gmra.mxu0 %v1134
  %v1174 = vpop.f32.mrf.mxu0
  %v1175 = vadd.f32 0.0, %v1174
  %1176 = vdwg.mxu0
  %v1177 = vadd.f32 %v800, %v1154
  %v1178 = vadd.f32 %v803, %v1157
  %v1179 = vadd.f32 %v806, %v1160
  %v1180 = vadd.f32 %v809, %v1163
  %v1181 = vadd.f32 %v812, %v1166
  %v1182 = vadd.f32 %v815, %v1169
  %v1183 = vadd.f32 %v818, %v1172
  %v1184 = vadd.f32 %v821, %v1175
  %1185 = vrot.lane.b32.xlu0 %v74, 32
  %v1186 = vpop.permute.xlu0 %1185
  %1187 = vrot.lane.b32.xlu0 %v77, 32
  %v1188 = vpop.permute.xlu0 %1187
  %1189 = vrot.lane.b32.xlu0 %v80, 32
  %v1190 = vpop.permute.xlu0 %1189
  %1191 = vrot.lane.b32.xlu0 %v83, 32
  %v1192 = vpop.permute.xlu0 %1191
  %1193 = vrot.lane.b32.xlu0 %v86, 32
  %v1194 = vpop.permute.xlu0 %1193
  %1195 = vrot.lane.b32.xlu0 %v89, 32
  %v1196 = vpop.permute.xlu0 %1195
  %1197 = vrot.lane.b32.xlu0 %v92, 32
  %v1198 = vpop.permute.xlu0 %1197
  %1199 = vrot.lane.b32.xlu0 %v95, 32
  %v1200 = vpop.permute.xlu0 %1199
  %v1201 = vsel %vm31, %v1186, 0
  %v1203 = vsel %vm31, %v1188, 0
  %v1205 = vsel %vm31, %v1190, 0
  %v1207 = vsel %vm31, %v1192, 0
  %v1209 = vsel %vm31, %v1194, 0
  %v1211 = vsel %vm31, %v1196, 0
  %v1213 = vsel %vm31, %v1198, 0
  %v1215 = vsel %vm31, %v1200, 0
  %1217 = vmatpush.xpose.msra.mxu0 0.0
  %1218 = vmatpush.xpose.msra.mxu0 0.0
  %1219 = vmatpush.xpose.msra.mxu0 0.0
  %1220 = vmatpush.xpose.msra.mxu0 0.0
  %1221 = vmatpush.xpose.msra.mxu0 0.0
  %1222 = vmatpush.xpose.msra.mxu0 0.0
  %1223 = vmatpush.xpose.msra.mxu0 0.0
  %1224 = vmatpush.xpose.msra.mxu0 0.0
  %1225 = vmatpush.xpose.msra.mxu0 %v54
  %1226 = vmatpush.xpose.msra.mxu0 %v51
  %1227 = vmatpush.xpose.msra.mxu0 %v48
  %1228 = vmatpush.xpose.msra.mxu0 %v45
  %1229 = vmatpush.xpose.msra.mxu0 %v42
  %1230 = vmatpush.xpose.msra.mxu0 %v39
  %1231 = vmatpush.xpose.msra.mxu0 %v36
  %1232 = vmatpush.xpose.msra.mxu0 %v33
  %1233 = vmatmul.f32.gmra.mxu0 %v1201
  %v1234 = vpop.f32.mrf.mxu0
  %v1235 = vadd.f32 0.0, %v1234
  %1236 = vmatmul.f32.gmra.mxu0 %v1203
  %v1237 = vpop.f32.mrf.mxu0
  %v1238 = vadd.f32 0.0, %v1237
  %1239 = vmatmul.f32.gmra.mxu0 %v1205
  %v1240 = vpop.f32.mrf.mxu0
  %v1241 = vadd.f32 0.0, %v1240
  %1242 = vmatmul.f32.gmra.mxu0 %v1207
  %v1243 = vpop.f32.mrf.mxu0
  %v1244 = vadd.f32 0.0, %v1243
  %1245 = vmatmul.f32.gmra.mxu0 %v1209
  %v1246 = vpop.f32.mrf.mxu0
  %v1247 = vadd.f32 0.0, %v1246
  %1248 = vmatmul.f32.gmra.mxu0 %v1211
  %v1249 = vpop.f32.mrf.mxu0
  %v1250 = vadd.f32 0.0, %v1249
  %1251 = vmatmul.f32.gmra.mxu0 %v1213
  %v1252 = vpop.f32.mrf.mxu0
  %v1253 = vadd.f32 0.0, %v1252
  %1254 = vmatmul.f32.gmra.mxu0 %v1215
  %v1255 = vpop.f32.mrf.mxu0
  %v1256 = vadd.f32 0.0, %v1255
  %1257 = vdwg.mxu0
  %v1258 = vsel %vm203, %v1235, -inf
  %1259 = vmax.xlane.f32.xlu0 %v1258
  %v1260 = vpop.xlane.xlu0 %1259
  %v1261 = vsel %vm203, %v1238, -inf
  %1262 = vmax.xlane.f32.xlu0 %v1261
  %v1263 = vpop.xlane.xlu0 %1262
  %v1264 = vsel %vm203, %v1241, -inf
  %1265 = vmax.xlane.f32.xlu0 %v1264
  %v1266 = vpop.xlane.xlu0 %1265
  %v1267 = vsel %vm203, %v1244, -inf
  %1268 = vmax.xlane.f32.xlu0 %v1267
  %v1269 = vpop.xlane.xlu0 %1268
  %v1270 = vsel %vm203, %v1247, -inf
  %1271 = vmax.xlane.f32.xlu0 %v1270
  %v1272 = vpop.xlane.xlu0 %1271
  %v1273 = vsel %vm203, %v1250, -inf
  %1274 = vmax.xlane.f32.xlu0 %v1273
  %v1275 = vpop.xlane.xlu0 %1274
  %v1276 = vsel %vm203, %v1253, -inf
  %1277 = vmax.xlane.f32.xlu0 %v1276
  %v1278 = vpop.xlane.xlu0 %1277
  %v1279 = vsel %vm203, %v1256, -inf
  %1280 = vmax.xlane.f32.xlu0 %v1279
  %v1281 = vpop.xlane.xlu0 %1280
  %v1282 = vsub.f32 %v1235, %v1260
  %v1283 = vsub.f32 %v1238, %v1263
  %v1284 = vsub.f32 %v1241, %v1266
  %v1285 = vsub.f32 %v1244, %v1269
  %v1286 = vsub.f32 %v1247, %v1272
  %v1287 = vsub.f32 %v1250, %v1275
  %v1288 = vsub.f32 %v1253, %v1278
  %v1289 = vsub.f32 %v1256, %v1281
  %v1290 = vmul.f32 %v1282, 1.442695
  %v1291 = vpow.pop %v1290
  %v1292 = vmul.f32 %v1283, 1.442695
  %v1293 = vpow.pop %v1292
  %v1294 = vmul.f32 %v1284, 1.442695
  %v1295 = vpow.pop %v1294
  %v1296 = vmul.f32 %v1285, 1.442695
  %v1297 = vpow.pop %v1296
  %v1298 = vmul.f32 %v1286, 1.442695
  %v1299 = vpow.pop %v1298
  %v1300 = vmul.f32 %v1287, 1.442695
  %v1301 = vpow.pop %v1300
  %v1302 = vmul.f32 %v1288, 1.442695
  %v1303 = vpow.pop %v1302
  %v1304 = vmul.f32 %v1289, 1.442695
  %v1305 = vpow.pop %v1304
  %v1306 = vsel %vm203, %v1291, 0.0
  %1307 = vadd.xlane.f32.xlu0 %v1306
  %v1308 = vpop.xlane.xlu0 %1307
  %v1309 = vsel %vm203, %v1293, 0.0
  %1310 = vadd.xlane.f32.xlu0 %v1309
  %v1311 = vpop.xlane.xlu0 %1310
  %v1312 = vsel %vm203, %v1295, 0.0
  %1313 = vadd.xlane.f32.xlu0 %v1312
  %v1314 = vpop.xlane.xlu0 %1313
  %v1315 = vsel %vm203, %v1297, 0.0
  %1316 = vadd.xlane.f32.xlu0 %v1315
  %v1317 = vpop.xlane.xlu0 %1316
  %v1318 = vsel %vm203, %v1299, 0.0
  %1319 = vadd.xlane.f32.xlu0 %v1318
  %v1320 = vpop.xlane.xlu0 %1319
  %v1321 = vsel %vm203, %v1301, 0.0
  %1322 = vadd.xlane.f32.xlu0 %v1321
  %v1323 = vpop.xlane.xlu0 %1322
  %v1324 = vsel %vm203, %v1303, 0.0
  %1325 = vadd.xlane.f32.xlu0 %v1324
  %v1326 = vpop.xlane.xlu0 %1325
  %v1327 = vsel %vm203, %v1305, 0.0
  %1328 = vadd.xlane.f32.xlu0 %v1327
  %v1329 = vpop.xlane.xlu0 %1328
  %v1330 = vrcp.pop %v1308
  %v1331 = vmul.f32 %v1308, %v1330
  %v1332 = vsub.f32 1.0, %v1331
  %v1333 = vmul.f32 %v1330, %v1332
  %v1334 = vadd.f32 %v1330, %v1333
  %vm1335 = vweird.f32 %v1308
  %vm1336 = vweird.f32 %v1330
  %vm1337 = vmor %vm1335, %vm1336
  %v1338 = vsel %vm1337, %v1330, %v1334
  %v1339 = vand.u32 2147483647, %v1308
  %vm1340 = vcmp.eq.f32.partialorder %v1339, 8.507059e+37
  %v1341 = vand.u32 %v1308, 2147483648
  %v1342 = vor.u32 1.1754944e-38, %v1341
  %v1343 = vsel %vm1340, %v1342, %v1338
  %v1344 = vmul.f32 %v1291, %v1343
  %v1345 = vrcp.pop %v1311
  %v1346 = vmul.f32 %v1311, %v1345
  %v1347 = vsub.f32 1.0, %v1346
  %v1348 = vmul.f32 %v1345, %v1347
  %v1349 = vadd.f32 %v1345, %v1348
  %vm1350 = vweird.f32 %v1311
  %vm1351 = vweird.f32 %v1345
  %vm1352 = vmor %vm1350, %vm1351
  %v1353 = vsel %vm1352, %v1345, %v1349
  %v1354 = vand.u32 2147483647, %v1311
  %vm1355 = vcmp.eq.f32.partialorder %v1354, 8.507059e+37
  %v1356 = vand.u32 %v1311, 2147483648
  %v1357 = vor.u32 1.1754944e-38, %v1356
  %v1358 = vsel %vm1355, %v1357, %v1353
  %v1359 = vmul.f32 %v1293, %v1358
  %v1360 = vrcp.pop %v1314
  %v1361 = vmul.f32 %v1314, %v1360
  %v1362 = vsub.f32 1.0, %v1361
  %v1363 = vmul.f32 %v1360, %v1362
  %v1364 = vadd.f32 %v1360, %v1363
  %vm1365 = vweird.f32 %v1314
  %vm1366 = vweird.f32 %v1360
  %vm1367 = vmor %vm1365, %vm1366
  %v1368 = vsel %vm1367, %v1360, %v1364
  %v1369 = vand.u32 2147483647, %v1314
  %vm1370 = vcmp.eq.f32.partialorder %v1369, 8.507059e+37
  %v1371 = vand.u32 %v1314, 2147483648
  %v1372 = vor.u32 1.1754944e-38, %v1371
  %v1373 = vsel %vm1370, %v1372, %v1368
  %v1374 = vmul.f32 %v1295, %v1373
  %v1375 = vrcp.pop %v1317
  %v1376 = vmul.f32 %v1317, %v1375
  %v1377 = vsub.f32 1.0, %v1376
  %v1378 = vmul.f32 %v1375, %v1377
  %v1379 = vadd.f32 %v1375, %v1378
  %vm1380 = vweird.f32 %v1317
  %vm1381 = vweird.f32 %v1375
  %vm1382 = vmor %vm1380, %vm1381
  %v1383 = vsel %vm1382, %v1375, %v1379
  %v1384 = vand.u32 2147483647, %v1317
  %vm1385 = vcmp.eq.f32.partialorder %v1384, 8.507059e+37
  %v1386 = vand.u32 %v1317, 2147483648
  %v1387 = vor.u32 1.1754944e-38, %v1386
  %v1388 = vsel %vm1385, %v1387, %v1383
  %v1389 = vmul.f32 %v1297, %v1388
  %v1390 = vrcp.pop %v1320
  %v1391 = vmul.f32 %v1320, %v1390
  %v1392 = vsub.f32 1.0, %v1391
  %v1393 = vmul.f32 %v1390, %v1392
  %v1394 = vadd.f32 %v1390, %v1393
  %vm1395 = vweird.f32 %v1320
  %vm1396 = vweird.f32 %v1390
  %vm1397 = vmor %vm1395, %vm1396
  %v1398 = vsel %vm1397, %v1390, %v1394
  %v1399 = vand.u32 2147483647, %v1320
  %vm1400 = vcmp.eq.f32.partialorder %v1399, 8.507059e+37
  %v1401 = vand.u32 %v1320, 2147483648
  %v1402 = vor.u32 1.1754944e-38, %v1401
  %v1403 = vsel %vm1400, %v1402, %v1398
  %v1404 = vmul.f32 %v1299, %v1403
  %v1405 = vrcp.pop %v1323
  %v1406 = vmul.f32 %v1323, %v1405
  %v1407 = vsub.f32 1.0, %v1406
  %v1408 = vmul.f32 %v1405, %v1407
  %v1409 = vadd.f32 %v1405, %v1408
  %vm1410 = vweird.f32 %v1323
  %vm1411 = vweird.f32 %v1405
  %vm1412 = vmor %vm1410, %vm1411
  %v1413 = vsel %vm1412, %v1405, %v1409
  %v1414 = vand.u32 2147483647, %v1323
  %vm1415 = vcmp.eq.f32.partialorder %v1414, 8.507059e+37
  %v1416 = vand.u32 %v1323, 2147483648
  %v1417 = vor.u32 1.1754944e-38, %v1416
  %v1418 = vsel %vm1415, %v1417, %v1413
  %v1419 = vmul.f32 %v1301, %v1418
  %v1420 = vrcp.pop %v1326
  %v1421 = vmul.f32 %v1326, %v1420
  %v1422 = vsub.f32 1.0, %v1421
  %v1423 = vmul.f32 %v1420, %v1422
  %v1424 = vadd.f32 %v1420, %v1423
  %vm1425 = vweird.f32 %v1326
  %vm1426 = vweird.f32 %v1420
  %vm1427 = vmor %vm1425, %vm1426
  %v1428 = vsel %vm1427, %v1420, %v1424
  %v1429 = vand.u32 2147483647, %v1326
  %vm1430 = vcmp.eq.f32.partialorder %v1429, 8.507059e+37
  %v1431 = vand.u32 %v1326, 2147483648
  %v1432 = vor.u32 1.1754944e-38, %v1431
  %v1433 = vsel %vm1430, %v1432, %v1428
  %v1434 = vmul.f32 %v1303, %v1433
  %v1435 = vrcp.pop %v1329
  %v1436 = vmul.f32 %v1329, %v1435
  %v1437 = vsub.f32 1.0, %v1436
  %v1438 = vmul.f32 %v1435, %v1437
  %v1439 = vadd.f32 %v1435, %v1438
  %vm1440 = vweird.f32 %v1329
  %vm1441 = vweird.f32 %v1435
  %vm1442 = vmor %vm1440, %vm1441
  %v1443 = vsel %vm1442, %v1435, %v1439
  %v1444 = vand.u32 2147483647, %v1329
  %vm1445 = vcmp.eq.f32.partialorder %v1444, 8.507059e+37
  %v1446 = vand.u32 %v1329, 2147483648
  %v1447 = vor.u32 1.1754944e-38, %v1446
  %v1448 = vsel %vm1445, %v1447, %v1443
  %v1449 = vmul.f32 %v1305, %v1448
  %1450 = vrot.lane.b32.xlu0 %v115, 32
  %v1451 = vpop.permute.xlu0 %1450
  %1452 = vrot.lane.b32.xlu0 %v118, 32
  %v1453 = vpop.permute.xlu0 %1452
  %1454 = vrot.lane.b32.xlu0 %v121, 32
  %v1455 = vpop.permute.xlu0 %1454
  %1456 = vrot.lane.b32.xlu0 %v124, 32
  %v1457 = vpop.permute.xlu0 %1456
  %1458 = vrot.lane.b32.xlu0 %v127, 32
  %v1459 = vpop.permute.xlu0 %1458
  %1460 = vrot.lane.b32.xlu0 %v130, 32
  %v1461 = vpop.permute.xlu0 %1460
  %1462 = vrot.lane.b32.xlu0 %v133, 32
  %v1463 = vpop.permute.xlu0 %1462
  %1464 = vrot.lane.b32.xlu0 %v136, 32
  %v1465 = vpop.permute.xlu0 %1464
  %v1475 = vsel %vm203, %v1344, 0
  %v1478 = vsel %vm203, %v1359, 0
  %v1481 = vsel %vm203, %v1374, 0
  %v1484 = vsel %vm203, %v1389, 0
  %v1487 = vsel %vm203, %v1404, 0
  %v1490 = vsel %vm203, %v1419, 0
  %v1493 = vsel %vm203, %v1434, 0
  %v1496 = vsel %vm203, %v1449, 0
  %1498 = vmatpush.msra.mxu0 0.0
  %1499 = vmatpush.msra.mxu0 0.0
  %1500 = vmatpush.msra.mxu0 0.0
  %1501 = vmatpush.msra.mxu0 0.0
  %1502 = vmatpush.msra.mxu0 0.0
  %1503 = vmatpush.msra.mxu0 0.0
  %1504 = vmatpush.msra.mxu0 0.0
  %1505 = vmatpush.msra.mxu0 0.0
  %1506 = vmatpush.msra.mxu0 %v1465
  %1507 = vmatpush.msra.mxu0 %v1463
  %1508 = vmatpush.msra.mxu0 %v1461
  %1509 = vmatpush.msra.mxu0 %v1459
  %1510 = vmatpush.msra.mxu0 %v1457
  %1511 = vmatpush.msra.mxu0 %v1455
  %1512 = vmatpush.msra.mxu0 %v1453
  %1513 = vmatpush.msra.mxu0 %v1451
  %1514 = vmatmul.f32.gmra.mxu0 %v1475
  %v1515 = vpop.f32.mrf.mxu0
  %v1516 = vadd.f32 0.0, %v1515
  %1517 = vmatmul.f32.gmra.mxu0 %v1478
  %v1518 = vpop.f32.mrf.mxu0
  %v1519 = vadd.f32 0.0, %v1518
  %1520 = vmatmul.f32.gmra.mxu0 %v1481
  %v1521 = vpop.f32.mrf.mxu0
  %v1522 = vadd.f32 0.0, %v1521
  %1523 = vmatmul.f32.gmra.mxu0 %v1484
  %v1524 = vpop.f32.mrf.mxu0
  %v1525 = vadd.f32 0.0, %v1524
  %1526 = vmatmul.f32.gmra.mxu0 %v1487
  %v1527 = vpop.f32.mrf.mxu0
  %v1528 = vadd.f32 0.0, %v1527
  %1529 = vmatmul.f32.gmra.mxu0 %v1490
  %v1530 = vpop.f32.mrf.mxu0
  %v1531 = vadd.f32 0.0, %v1530
  %1532 = vmatmul.f32.gmra.mxu0 %v1493
  %v1533 = vpop.f32.mrf.mxu0
  %v1534 = vadd.f32 0.0, %v1533
  %1535 = vmatmul.f32.gmra.mxu0 %v1496
  %v1536 = vpop.f32.mrf.mxu0
  %v1537 = vadd.f32 0.0, %v1536
  %1538 = vdwg.mxu0
  %v1539 = vadd.f32 %v1177, %v1516
  %v1540 = vadd.f32 %v1178, %v1519
  %v1541 = vadd.f32 %v1179, %v1522
  %v1542 = vadd.f32 %v1180, %v1525
  %v1543 = vadd.f32 %v1181, %v1528
  %v1544 = vadd.f32 %v1182, %v1531
  %v1545 = vadd.f32 %v1183, %v1534
  %v1546 = vadd.f32 %v1184, %v1537
  %v1548 = vperm.slane %v22, 0
  %v1550 = vadd.f32 %v1539, %v1548
  %v1551 = vadd.f32 %v1540, %v1548
  %v1552 = vadd.f32 %v1541, %v1548
  %v1553 = vadd.f32 %v1542, %v1548
  %v1554 = vadd.f32 %v1543, %v1548
  %v1555 = vadd.f32 %v1544, %v1548
  %v1556 = vadd.f32 %v1545, %v1548
  %v1557 = vadd.f32 %v1546, %v1548
  %1558 = vst.msk [vmem:[%s3] sm:$0xff] %vm31, %v1550
  %1559 = vst.msk [vmem:[%s3 + $0x8] sm:$0xff] %vm31, %v1551
  %1560 = vst.msk [vmem:[%s3 + $0x10] sm:$0xff] %vm31, %v1552
  %1561 = vst.msk [vmem:[%s3 + $0x18] sm:$0xff] %vm31, %v1553
  %1562 = vst.msk [vmem:[%s3 + $0x20] sm:$0xff] %vm31, %v1554
  %1563 = vst.msk [vmem:[%s3 + $0x28] sm:$0xff] %vm31, %v1555
  %1564 = vst.msk [vmem:[%s3 + $0x30] sm:$0xff] %vm31, %v1556
  %1565 = vst.msk [vmem:[%s3 + $0x38] sm:$0xff] %vm31, %v1557
  %s1566 = scalar_lea.vmem %s0, 64
  %v1567 = vld [vmem:[%s1566] sm:$0xff]
  %v1568 = vld [vmem:[%s1566 + $0x8] sm:$0xff]
  %v1569 = vld [vmem:[%s1566 + $0x10] sm:$0xff]
  %v1570 = vld [vmem:[%s1566 + $0x18] sm:$0xff]
  %v1571 = vld [vmem:[%s1566 + $0x20] sm:$0xff]
  %v1572 = vld [vmem:[%s1566 + $0x28] sm:$0xff]
  %v1573 = vld [vmem:[%s1566 + $0x30] sm:$0xff]
  %v1574 = vld [vmem:[%s1566 + $0x38] sm:$0xff]
  %v1576 = vsel %vm31, %v1567, 0
  %v1579 = vsel %vm31, %v1568, 0
  %v1582 = vsel %vm31, %v1569, 0
  %v1585 = vsel %vm31, %v1570, 0
  %v1588 = vsel %vm31, %v1571, 0
  %v1591 = vsel %vm31, %v1572, 0
  %v1594 = vsel %vm31, %v1573, 0
  %v1597 = vsel %vm31, %v1574, 0
  %1599 = vmatpush.msra.mxu0 0.0
  %1600 = vmatpush.msra.mxu0 0.0
  %1601 = vmatpush.msra.mxu0 0.0
  %1602 = vmatpush.msra.mxu0 0.0
  %1603 = vmatpush.msra.mxu0 0.0
  %1604 = vmatpush.msra.mxu0 0.0
  %1605 = vmatpush.msra.mxu0 0.0
  %1606 = vmatpush.msra.mxu0 0.0
  %1607 = vmatpush.msra.mxu0 0.0
  %1608 = vmatpush.msra.mxu0 0.0
  %1609 = vmatpush.msra.mxu0 0.0
  %1610 = vmatpush.msra.mxu0 0.0
  %1611 = vmatpush.msra.mxu0 %v20
  %1612 = vmatpush.msra.mxu0 %v18
  %1613 = vmatpush.msra.mxu0 %v16
  %1614 = vmatpush.msra.mxu0 %v14
  %1615 = vmatmul.f32.gmra.mxu0 %v1576
  %v1616 = vpop.f32.mrf.mxu0
  %v1617 = vadd.f32 0.0, %v1616
  %1618 = vmatmul.f32.gmra.mxu0 %v1579
  %v1619 = vpop.f32.mrf.mxu0
  %v1620 = vadd.f32 0.0, %v1619
  %1621 = vmatmul.f32.gmra.mxu0 %v1582
  %v1622 = vpop.f32.mrf.mxu0
  %v1623 = vadd.f32 0.0, %v1622
  %1624 = vmatmul.f32.gmra.mxu0 %v1585
  %v1625 = vpop.f32.mrf.mxu0
  %v1626 = vadd.f32 0.0, %v1625
  %1627 = vmatmul.f32.gmra.mxu0 %v1588
  %v1628 = vpop.f32.mrf.mxu0
  %v1629 = vadd.f32 0.0, %v1628
  %1630 = vmatmul.f32.gmra.mxu0 %v1591
  %v1631 = vpop.f32.mrf.mxu0
  %v1632 = vadd.f32 0.0, %v1631
  %1633 = vmatmul.f32.gmra.mxu0 %v1594
  %v1634 = vpop.f32.mrf.mxu0
  %v1635 = vadd.f32 0.0, %v1634
  %1636 = vmatmul.f32.gmra.mxu0 %v1597
  %v1637 = vpop.f32.mrf.mxu0
  %v1638 = vadd.f32 0.0, %v1637
  %1639 = vdwg.mxu0
  %1640 = vmatpush.msra.mxu0 0.0
  %1641 = vmatpush.msra.mxu0 0.0
  %1642 = vmatpush.msra.mxu0 0.0
  %1643 = vmatpush.msra.mxu0 0.0
  %1644 = vmatpush.msra.mxu0 0.0
  %1645 = vmatpush.msra.mxu0 0.0
  %1646 = vmatpush.msra.mxu0 0.0
  %1647 = vmatpush.msra.mxu0 0.0
  %1648 = vmatpush.msra.mxu0 0.0
  %1649 = vmatpush.msra.mxu0 0.0
  %1650 = vmatpush.msra.mxu0 0.0
  %1651 = vmatpush.msra.mxu0 0.0
  %1652 = vmatpush.msra.mxu0 %v21
  %1653 = vmatpush.msra.mxu0 %v19
  %1654 = vmatpush.msra.mxu0 %v17
  %1655 = vmatpush.msra.mxu0 %v15
  %1656 = vmatmul.f32.gmra.mxu0 %v1576
  %v1657 = vpop.f32.mrf.mxu0
  %v1658 = vadd.f32 0.0, %v1657
  %1659 = vmatmul.f32.gmra.mxu0 %v1579
  %v1660 = vpop.f32.mrf.mxu0
  %v1661 = vadd.f32 0.0, %v1660
  %1662 = vmatmul.f32.gmra.mxu0 %v1582
  %v1663 = vpop.f32.mrf.mxu0
  %v1664 = vadd.f32 0.0, %v1663
  %1665 = vmatmul.f32.gmra.mxu0 %v1585
  %v1666 = vpop.f32.mrf.mxu0
  %v1667 = vadd.f32 0.0, %v1666
  %1668 = vmatmul.f32.gmra.mxu0 %v1588
  %v1669 = vpop.f32.mrf.mxu0
  %v1670 = vadd.f32 0.0, %v1669
  %1671 = vmatmul.f32.gmra.mxu0 %v1591
  %v1672 = vpop.f32.mrf.mxu0
  %v1673 = vadd.f32 0.0, %v1672
  %1674 = vmatmul.f32.gmra.mxu0 %v1594
  %v1675 = vpop.f32.mrf.mxu0
  %v1676 = vadd.f32 0.0, %v1675
  %1677 = vmatmul.f32.gmra.mxu0 %v1597
  %v1678 = vpop.f32.mrf.mxu0
  %v1679 = vadd.f32 0.0, %v1678
  %1680 = vdwg.mxu0
  %v1682 = vsel %vm31, %v1617, 0
  %v1685 = vsel %vm31, %v1620, 0
  %v1688 = vsel %vm31, %v1623, 0
  %v1691 = vsel %vm31, %v1626, 0
  %v1694 = vsel %vm31, %v1629, 0
  %v1697 = vsel %vm31, %v1632, 0
  %v1700 = vsel %vm31, %v1635, 0
  %v1703 = vsel %vm31, %v1638, 0
  %1705 = vmatpush.xpose.msra.mxu0 0.0
  %1706 = vmatpush.xpose.msra.mxu0 0.0
  %1707 = vmatpush.xpose.msra.mxu0 0.0
  %1708 = vmatpush.xpose.msra.mxu0 0.0
  %1709 = vmatpush.xpose.msra.mxu0 0.0
  %1710 = vmatpush.xpose.msra.mxu0 0.0
  %1711 = vmatpush.xpose.msra.mxu0 0.0
  %1712 = vmatpush.xpose.msra.mxu0 0.0
  %1713 = vmatpush.xpose.msra.mxu0 %v1597
  %1714 = vmatpush.xpose.msra.mxu0 %v1594
  %1715 = vmatpush.xpose.msra.mxu0 %v1591
  %1716 = vmatpush.xpose.msra.mxu0 %v1588
  %1717 = vmatpush.xpose.msra.mxu0 %v1585
  %1718 = vmatpush.xpose.msra.mxu0 %v1582
  %1719 = vmatpush.xpose.msra.mxu0 %v1579
  %1720 = vmatpush.xpose.msra.mxu0 %v1576
  %1721 = vmatmul.f32.gmra.mxu0 %v1682
  %v1722 = vpop.f32.mrf.mxu0
  %v1723 = vadd.f32 0.0, %v1722
  %1724 = vmatmul.f32.gmra.mxu0 %v1685
  %v1725 = vpop.f32.mrf.mxu0
  %v1726 = vadd.f32 0.0, %v1725
  %1727 = vmatmul.f32.gmra.mxu0 %v1688
  %v1728 = vpop.f32.mrf.mxu0
  %v1729 = vadd.f32 0.0, %v1728
  %1730 = vmatmul.f32.gmra.mxu0 %v1691
  %v1731 = vpop.f32.mrf.mxu0
  %v1732 = vadd.f32 0.0, %v1731
  %1733 = vmatmul.f32.gmra.mxu0 %v1694
  %v1734 = vpop.f32.mrf.mxu0
  %v1735 = vadd.f32 0.0, %v1734
  %1736 = vmatmul.f32.gmra.mxu0 %v1697
  %v1737 = vpop.f32.mrf.mxu0
  %v1738 = vadd.f32 0.0, %v1737
  %1739 = vmatmul.f32.gmra.mxu0 %v1700
  %v1740 = vpop.f32.mrf.mxu0
  %v1741 = vadd.f32 0.0, %v1740
  %1742 = vmatmul.f32.gmra.mxu0 %v1703
  %v1743 = vpop.f32.mrf.mxu0
  %v1744 = vadd.f32 0.0, %v1743
  %1745 = vdwg.mxu0
  %v1746 = vsel %vm203, %v1723, -inf
  %1747 = vmax.xlane.f32.xlu0 %v1746
  %v1748 = vpop.xlane.xlu0 %1747
  %v1749 = vsel %vm203, %v1726, -inf
  %1750 = vmax.xlane.f32.xlu0 %v1749
  %v1751 = vpop.xlane.xlu0 %1750
  %v1752 = vsel %vm203, %v1729, -inf
  %1753 = vmax.xlane.f32.xlu0 %v1752
  %v1754 = vpop.xlane.xlu0 %1753
  %v1755 = vsel %vm203, %v1732, -inf
  %1756 = vmax.xlane.f32.xlu0 %v1755
  %v1757 = vpop.xlane.xlu0 %1756
  %v1758 = vsel %vm203, %v1735, -inf
  %1759 = vmax.xlane.f32.xlu0 %v1758
  %v1760 = vpop.xlane.xlu0 %1759
  %v1761 = vsel %vm203, %v1738, -inf
  %1762 = vmax.xlane.f32.xlu0 %v1761
  %v1763 = vpop.xlane.xlu0 %1762
  %v1764 = vsel %vm203, %v1741, -inf
  %1765 = vmax.xlane.f32.xlu0 %v1764
  %v1766 = vpop.xlane.xlu0 %1765
  %v1767 = vsel %vm203, %v1744, -inf
  %1768 = vmax.xlane.f32.xlu0 %v1767
  %v1769 = vpop.xlane.xlu0 %1768
  %v1770 = vsub.f32 %v1723, %v1748
  %v1771 = vsub.f32 %v1726, %v1751
  %v1772 = vsub.f32 %v1729, %v1754
  %v1773 = vsub.f32 %v1732, %v1757
  %v1774 = vsub.f32 %v1735, %v1760
  %v1775 = vsub.f32 %v1738, %v1763
  %v1776 = vsub.f32 %v1741, %v1766
  %v1777 = vsub.f32 %v1744, %v1769
  %v1778 = vmul.f32 %v1770, 1.442695
  %v1779 = vpow.pop %v1778
  %v1780 = vmul.f32 %v1771, 1.442695
  %v1781 = vpow.pop %v1780
  %v1782 = vmul.f32 %v1772, 1.442695
  %v1783 = vpow.pop %v1782
  %v1784 = vmul.f32 %v1773, 1.442695
  %v1785 = vpow.pop %v1784
  %v1786 = vmul.f32 %v1774, 1.442695
  %v1787 = vpow.pop %v1786
  %v1788 = vmul.f32 %v1775, 1.442695
  %v1789 = vpow.pop %v1788
  %v1790 = vmul.f32 %v1776, 1.442695
  %v1791 = vpow.pop %v1790
  %v1792 = vmul.f32 %v1777, 1.442695
  %v1793 = vpow.pop %v1792
  %v1794 = vsel %vm203, %v1779, 0.0
  %1795 = vadd.xlane.f32.xlu0 %v1794
  %v1796 = vpop.xlane.xlu0 %1795
  %v1797 = vsel %vm203, %v1781, 0.0
  %1798 = vadd.xlane.f32.xlu0 %v1797
  %v1799 = vpop.xlane.xlu0 %1798
  %v1800 = vsel %vm203, %v1783, 0.0
  %1801 = vadd.xlane.f32.xlu0 %v1800
  %v1802 = vpop.xlane.xlu0 %1801
  %v1803 = vsel %vm203, %v1785, 0.0
  %1804 = vadd.xlane.f32.xlu0 %v1803
  %v1805 = vpop.xlane.xlu0 %1804
  %v1806 = vsel %vm203, %v1787, 0.0
  %1807 = vadd.xlane.f32.xlu0 %v1806
  %v1808 = vpop.xlane.xlu0 %1807
  %v1809 = vsel %vm203, %v1789, 0.0
  %1810 = vadd.xlane.f32.xlu0 %v1809
  %v1811 = vpop.xlane.xlu0 %1810
  %v1812 = vsel %vm203, %v1791, 0.0
  %1813 = vadd.xlane.f32.xlu0 %v1812
  %v1814 = vpop.xlane.xlu0 %1813
  %v1815 = vsel %vm203, %v1793, 0.0
  %1816 = vadd.xlane.f32.xlu0 %v1815
  %v1817 = vpop.xlane.xlu0 %1816
  %v1818 = vrcp.pop %v1796
  %v1819 = vmul.f32 %v1796, %v1818
  %v1820 = vsub.f32 1.0, %v1819
  %v1821 = vmul.f32 %v1818, %v1820
  %v1822 = vadd.f32 %v1818, %v1821
  %vm1823 = vweird.f32 %v1796
  %vm1824 = vweird.f32 %v1818
  %vm1825 = vmor %vm1823, %vm1824
  %v1826 = vsel %vm1825, %v1818, %v1822
  %v1827 = vand.u32 2147483647, %v1796
  %vm1828 = vcmp.eq.f32.partialorder %v1827, 8.507059e+37
  %v1829 = vand.u32 %v1796, 2147483648
  %v1830 = vor.u32 1.1754944e-38, %v1829
  %v1831 = vsel %vm1828, %v1830, %v1826
  %v1832 = vmul.f32 %v1779, %v1831
  %v1833 = vrcp.pop %v1799
  %v1834 = vmul.f32 %v1799, %v1833
  %v1835 = vsub.f32 1.0, %v1834
  %v1836 = vmul.f32 %v1833, %v1835
  %v1837 = vadd.f32 %v1833, %v1836
  %vm1838 = vweird.f32 %v1799
  %vm1839 = vweird.f32 %v1833
  %vm1840 = vmor %vm1838, %vm1839
  %v1841 = vsel %vm1840, %v1833, %v1837
  %v1842 = vand.u32 2147483647, %v1799
  %vm1843 = vcmp.eq.f32.partialorder %v1842, 8.507059e+37
  %v1844 = vand.u32 %v1799, 2147483648
  %v1845 = vor.u32 1.1754944e-38, %v1844
  %v1846 = vsel %vm1843, %v1845, %v1841
  %v1847 = vmul.f32 %v1781, %v1846
  %v1848 = vrcp.pop %v1802
  %v1849 = vmul.f32 %v1802, %v1848
  %v1850 = vsub.f32 1.0, %v1849
  %v1851 = vmul.f32 %v1848, %v1850
  %v1852 = vadd.f32 %v1848, %v1851
  %vm1853 = vweird.f32 %v1802
  %vm1854 = vweird.f32 %v1848
  %vm1855 = vmor %vm1853, %vm1854
  %v1856 = vsel %vm1855, %v1848, %v1852
  %v1857 = vand.u32 2147483647, %v1802
  %vm1858 = vcmp.eq.f32.partialorder %v1857, 8.507059e+37
  %v1859 = vand.u32 %v1802, 2147483648
  %v1860 = vor.u32 1.1754944e-38, %v1859
  %v1861 = vsel %vm1858, %v1860, %v1856
  %v1862 = vmul.f32 %v1783, %v1861
  %v1863 = vrcp.pop %v1805
  %v1864 = vmul.f32 %v1805, %v1863
  %v1865 = vsub.f32 1.0, %v1864
  %v1866 = vmul.f32 %v1863, %v1865
  %v1867 = vadd.f32 %v1863, %v1866
  %vm1868 = vweird.f32 %v1805
  %vm1869 = vweird.f32 %v1863
  %vm1870 = vmor %vm1868, %vm1869
  %v1871 = vsel %vm1870, %v1863, %v1867
  %v1872 = vand.u32 2147483647, %v1805
  %vm1873 = vcmp.eq.f32.partialorder %v1872, 8.507059e+37
  %v1874 = vand.u32 %v1805, 2147483648
  %v1875 = vor.u32 1.1754944e-38, %v1874
  %v1876 = vsel %vm1873, %v1875, %v1871
  %v1877 = vmul.f32 %v1785, %v1876
  %v1878 = vrcp.pop %v1808
  %v1879 = vmul.f32 %v1808, %v1878
  %v1880 = vsub.f32 1.0, %v1879
  %v1881 = vmul.f32 %v1878, %v1880
  %v1882 = vadd.f32 %v1878, %v1881
  %vm1883 = vweird.f32 %v1808
  %vm1884 = vweird.f32 %v1878
  %vm1885 = vmor %vm1883, %vm1884
  %v1886 = vsel %vm1885, %v1878, %v1882
  %v1887 = vand.u32 2147483647, %v1808
  %vm1888 = vcmp.eq.f32.partialorder %v1887, 8.507059e+37
  %v1889 = vand.u32 %v1808, 2147483648
  %v1890 = vor.u32 1.1754944e-38, %v1889
  %v1891 = vsel %vm1888, %v1890, %v1886
  %v1892 = vmul.f32 %v1787, %v1891
  %v1893 = vrcp.pop %v1811
  %v1894 = vmul.f32 %v1811, %v1893
  %v1895 = vsub.f32 1.0, %v1894
  %v1896 = vmul.f32 %v1893, %v1895
  %v1897 = vadd.f32 %v1893, %v1896
  %vm1898 = vweird.f32 %v1811
  %vm1899 = vweird.f32 %v1893
  %vm1900 = vmor %vm1898, %vm1899
  %v1901 = vsel %vm1900, %v1893, %v1897
  %v1902 = vand.u32 2147483647, %v1811
  %vm1903 = vcmp.eq.f32.partialorder %v1902, 8.507059e+37
  %v1904 = vand.u32 %v1811, 2147483648
  %v1905 = vor.u32 1.1754944e-38, %v1904
  %v1906 = vsel %vm1903, %v1905, %v1901
  %v1907 = vmul.f32 %v1789, %v1906
  %v1908 = vrcp.pop %v1814
  %v1909 = vmul.f32 %v1814, %v1908
  %v1910 = vsub.f32 1.0, %v1909
  %v1911 = vmul.f32 %v1908, %v1910
  %v1912 = vadd.f32 %v1908, %v1911
  %vm1913 = vweird.f32 %v1814
  %vm1914 = vweird.f32 %v1908
  %vm1915 = vmor %vm1913, %vm1914
  %v1916 = vsel %vm1915, %v1908, %v1912
  %v1917 = vand.u32 2147483647, %v1814
  %vm1918 = vcmp.eq.f32.partialorder %v1917, 8.507059e+37
  %v1919 = vand.u32 %v1814, 2147483648
  %v1920 = vor.u32 1.1754944e-38, %v1919
  %v1921 = vsel %vm1918, %v1920, %v1916
  %v1922 = vmul.f32 %v1791, %v1921
  %v1923 = vrcp.pop %v1817
  %v1924 = vmul.f32 %v1817, %v1923
  %v1925 = vsub.f32 1.0, %v1924
  %v1926 = vmul.f32 %v1923, %v1925
  %v1927 = vadd.f32 %v1923, %v1926
  %vm1928 = vweird.f32 %v1817
  %vm1929 = vweird.f32 %v1923
  %vm1930 = vmor %vm1928, %vm1929
  %v1931 = vsel %vm1930, %v1923, %v1927
  %v1932 = vand.u32 2147483647, %v1817
  %vm1933 = vcmp.eq.f32.partialorder %v1932, 8.507059e+37
  %v1934 = vand.u32 %v1817, 2147483648
  %v1935 = vor.u32 1.1754944e-38, %v1934
  %v1936 = vsel %vm1933, %v1935, %v1931
  %v1937 = vmul.f32 %v1793, %v1936
  %1938 = vrot.lane.b32.xlu0 %v1617, 96
  %v1939 = vpop.permute.xlu0 %1938
  %1940 = vrot.lane.b32.xlu0 %v1620, 96
  %v1941 = vpop.permute.xlu0 %1940
  %1942 = vrot.lane.b32.xlu0 %v1623, 96
  %v1943 = vpop.permute.xlu0 %1942
  %1944 = vrot.lane.b32.xlu0 %v1626, 96
  %v1945 = vpop.permute.xlu0 %1944
  %1946 = vrot.lane.b32.xlu0 %v1629, 96
  %v1947 = vpop.permute.xlu0 %1946
  %1948 = vrot.lane.b32.xlu0 %v1632, 96
  %v1949 = vpop.permute.xlu0 %1948
  %1950 = vrot.lane.b32.xlu0 %v1635, 96
  %v1951 = vpop.permute.xlu0 %1950
  %1952 = vrot.lane.b32.xlu0 %v1638, 96
  %v1953 = vpop.permute.xlu0 %1952
  %v1954 = vsel %vm31, %v1939, 0
  %v1956 = vsel %vm31, %v1941, 0
  %v1958 = vsel %vm31, %v1943, 0
  %v1960 = vsel %vm31, %v1945, 0
  %v1962 = vsel %vm31, %v1947, 0
  %v1964 = vsel %vm31, %v1949, 0
  %v1966 = vsel %vm31, %v1951, 0
  %v1968 = vsel %vm31, %v1953, 0
  %1970 = vmatpush.xpose.msra.mxu0 0.0
  %1971 = vmatpush.xpose.msra.mxu0 0.0
  %1972 = vmatpush.xpose.msra.mxu0 0.0
  %1973 = vmatpush.xpose.msra.mxu0 0.0
  %1974 = vmatpush.xpose.msra.mxu0 0.0
  %1975 = vmatpush.xpose.msra.mxu0 0.0
  %1976 = vmatpush.xpose.msra.mxu0 0.0
  %1977 = vmatpush.xpose.msra.mxu0 0.0
  %1978 = vmatpush.xpose.msra.mxu0 %v1597
  %1979 = vmatpush.xpose.msra.mxu0 %v1594
  %1980 = vmatpush.xpose.msra.mxu0 %v1591
  %1981 = vmatpush.xpose.msra.mxu0 %v1588
  %1982 = vmatpush.xpose.msra.mxu0 %v1585
  %1983 = vmatpush.xpose.msra.mxu0 %v1582
  %1984 = vmatpush.xpose.msra.mxu0 %v1579
  %1985 = vmatpush.xpose.msra.mxu0 %v1576
  %1986 = vmatmul.f32.gmra.mxu0 %v1954
  %v1987 = vpop.f32.mrf.mxu0
  %v1988 = vadd.f32 0.0, %v1987
  %1989 = vmatmul.f32.gmra.mxu0 %v1956
  %v1990 = vpop.f32.mrf.mxu0
  %v1991 = vadd.f32 0.0, %v1990
  %1992 = vmatmul.f32.gmra.mxu0 %v1958
  %v1993 = vpop.f32.mrf.mxu0
  %v1994 = vadd.f32 0.0, %v1993
  %1995 = vmatmul.f32.gmra.mxu0 %v1960
  %v1996 = vpop.f32.mrf.mxu0
  %v1997 = vadd.f32 0.0, %v1996
  %1998 = vmatmul.f32.gmra.mxu0 %v1962
  %v1999 = vpop.f32.mrf.mxu0
  %v2000 = vadd.f32 0.0, %v1999
  %2001 = vmatmul.f32.gmra.mxu0 %v1964
  %v2002 = vpop.f32.mrf.mxu0
  %v2003 = vadd.f32 0.0, %v2002
  %2004 = vmatmul.f32.gmra.mxu0 %v1966
  %v2005 = vpop.f32.mrf.mxu0
  %v2006 = vadd.f32 0.0, %v2005
  %2007 = vmatmul.f32.gmra.mxu0 %v1968
  %v2008 = vpop.f32.mrf.mxu0
  %v2009 = vadd.f32 0.0, %v2008
  %2010 = vdwg.mxu0
  %v2011 = vsel %vm203, %v1988, -inf
  %2012 = vmax.xlane.f32.xlu0 %v2011
  %v2013 = vpop.xlane.xlu0 %2012
  %v2014 = vsel %vm203, %v1991, -inf
  %2015 = vmax.xlane.f32.xlu0 %v2014
  %v2016 = vpop.xlane.xlu0 %2015
  %v2017 = vsel %vm203, %v1994, -inf
  %2018 = vmax.xlane.f32.xlu0 %v2017
  %v2019 = vpop.xlane.xlu0 %2018
  %v2020 = vsel %vm203, %v1997, -inf
  %2021 = vmax.xlane.f32.xlu0 %v2020
  %v2022 = vpop.xlane.xlu0 %2021
  %v2023 = vsel %vm203, %v2000, -inf
  %2024 = vmax.xlane.f32.xlu0 %v2023
  %v2025 = vpop.xlane.xlu0 %2024
  %v2026 = vsel %vm203, %v2003, -inf
  %2027 = vmax.xlane.f32.xlu0 %v2026
  %v2028 = vpop.xlane.xlu0 %2027
  %v2029 = vsel %vm203, %v2006, -inf
  %2030 = vmax.xlane.f32.xlu0 %v2029
  %v2031 = vpop.xlane.xlu0 %2030
  %v2032 = vsel %vm203, %v2009, -inf
  %2033 = vmax.xlane.f32.xlu0 %v2032
  %v2034 = vpop.xlane.xlu0 %2033
  %v2035 = vsub.f32 %v1988, %v2013
  %v2036 = vsub.f32 %v1991, %v2016
  %v2037 = vsub.f32 %v1994, %v2019
  %v2038 = vsub.f32 %v1997, %v2022
  %v2039 = vsub.f32 %v2000, %v2025
  %v2040 = vsub.f32 %v2003, %v2028
  %v2041 = vsub.f32 %v2006, %v2031
  %v2042 = vsub.f32 %v2009, %v2034
  %v2043 = vmul.f32 %v2035, 1.442695
  %v2044 = vpow.pop %v2043
  %v2045 = vmul.f32 %v2036, 1.442695
  %v2046 = vpow.pop %v2045
  %v2047 = vmul.f32 %v2037, 1.442695
  %v2048 = vpow.pop %v2047
  %v2049 = vmul.f32 %v2038, 1.442695
  %v2050 = vpow.pop %v2049
  %v2051 = vmul.f32 %v2039, 1.442695
  %v2052 = vpow.pop %v2051
  %v2053 = vmul.f32 %v2040, 1.442695
  %v2054 = vpow.pop %v2053
  %v2055 = vmul.f32 %v2041, 1.442695
  %v2056 = vpow.pop %v2055
  %v2057 = vmul.f32 %v2042, 1.442695
  %v2058 = vpow.pop %v2057
  %v2059 = vsel %vm203, %v2044, 0.0
  %2060 = vadd.xlane.f32.xlu0 %v2059
  %v2061 = vpop.xlane.xlu0 %2060
  %v2062 = vsel %vm203, %v2046, 0.0
  %2063 = vadd.xlane.f32.xlu0 %v2062
  %v2064 = vpop.xlane.xlu0 %2063
  %v2065 = vsel %vm203, %v2048, 0.0
  %2066 = vadd.xlane.f32.xlu0 %v2065
  %v2067 = vpop.xlane.xlu0 %2066
  %v2068 = vsel %vm203, %v2050, 0.0
  %2069 = vadd.xlane.f32.xlu0 %v2068
  %v2070 = vpop.xlane.xlu0 %2069
  %v2071 = vsel %vm203, %v2052, 0.0
  %2072 = vadd.xlane.f32.xlu0 %v2071
  %v2073 = vpop.xlane.xlu0 %2072
  %v2074 = vsel %vm203, %v2054, 0.0
  %2075 = vadd.xlane.f32.xlu0 %v2074
  %v2076 = vpop.xlane.xlu0 %2075
  %v2077 = vsel %vm203, %v2056, 0.0
  %2078 = vadd.xlane.f32.xlu0 %v2077
  %v2079 = vpop.xlane.xlu0 %2078
  %v2080 = vsel %vm203, %v2058, 0.0
  %2081 = vadd.xlane.f32.xlu0 %v2080
  %v2082 = vpop.xlane.xlu0 %2081
  %v2083 = vrcp.pop %v2061
  %v2084 = vmul.f32 %v2061, %v2083
  %v2085 = vsub.f32 1.0, %v2084
  %v2086 = vmul.f32 %v2083, %v2085
  %v2087 = vadd.f32 %v2083, %v2086
  %vm2088 = vweird.f32 %v2061
  %vm2089 = vweird.f32 %v2083
  %vm2090 = vmor %vm2088, %vm2089
  %v2091 = vsel %vm2090, %v2083, %v2087
  %v2092 = vand.u32 2147483647, %v2061
  %vm2093 = vcmp.eq.f32.partialorder %v2092, 8.507059e+37
  %v2094 = vand.u32 %v2061, 2147483648
  %v2095 = vor.u32 1.1754944e-38, %v2094
  %v2096 = vsel %vm2093, %v2095, %v2091
  %v2097 = vmul.f32 %v2044, %v2096
  %v2098 = vrcp.pop %v2064
  %v2099 = vmul.f32 %v2064, %v2098
  %v2100 = vsub.f32 1.0, %v2099
  %v2101 = vmul.f32 %v2098, %v2100
  %v2102 = vadd.f32 %v2098, %v2101
  %vm2103 = vweird.f32 %v2064
  %vm2104 = vweird.f32 %v2098
  %vm2105 = vmor %vm2103, %vm2104
  %v2106 = vsel %vm2105, %v2098, %v2102
  %v2107 = vand.u32 2147483647, %v2064
  %vm2108 = vcmp.eq.f32.partialorder %v2107, 8.507059e+37
  %v2109 = vand.u32 %v2064, 2147483648
  %v2110 = vor.u32 1.1754944e-38, %v2109
  %v2111 = vsel %vm2108, %v2110, %v2106
  %v2112 = vmul.f32 %v2046, %v2111
  %v2113 = vrcp.pop %v2067
  %v2114 = vmul.f32 %v2067, %v2113
  %v2115 = vsub.f32 1.0, %v2114
  %v2116 = vmul.f32 %v2113, %v2115
  %v2117 = vadd.f32 %v2113, %v2116
  %vm2118 = vweird.f32 %v2067
  %vm2119 = vweird.f32 %v2113
  %vm2120 = vmor %vm2118, %vm2119
  %v2121 = vsel %vm2120, %v2113, %v2117
  %v2122 = vand.u32 2147483647, %v2067
  %vm2123 = vcmp.eq.f32.partialorder %v2122, 8.507059e+37
  %v2124 = vand.u32 %v2067, 2147483648
  %v2125 = vor.u32 1.1754944e-38, %v2124
  %v2126 = vsel %vm2123, %v2125, %v2121
  %v2127 = vmul.f32 %v2048, %v2126
  %v2128 = vrcp.pop %v2070
  %v2129 = vmul.f32 %v2070, %v2128
  %v2130 = vsub.f32 1.0, %v2129
  %v2131 = vmul.f32 %v2128, %v2130
  %v2132 = vadd.f32 %v2128, %v2131
  %vm2133 = vweird.f32 %v2070
  %vm2134 = vweird.f32 %v2128
  %vm2135 = vmor %vm2133, %vm2134
  %v2136 = vsel %vm2135, %v2128, %v2132
  %v2137 = vand.u32 2147483647, %v2070
  %vm2138 = vcmp.eq.f32.partialorder %v2137, 8.507059e+37
  %v2139 = vand.u32 %v2070, 2147483648
  %v2140 = vor.u32 1.1754944e-38, %v2139
  %v2141 = vsel %vm2138, %v2140, %v2136
  %v2142 = vmul.f32 %v2050, %v2141
  %v2143 = vrcp.pop %v2073
  %v2144 = vmul.f32 %v2073, %v2143
  %v2145 = vsub.f32 1.0, %v2144
  %v2146 = vmul.f32 %v2143, %v2145
  %v2147 = vadd.f32 %v2143, %v2146
  %vm2148 = vweird.f32 %v2073
  %vm2149 = vweird.f32 %v2143
  %vm2150 = vmor %vm2148, %vm2149
  %v2151 = vsel %vm2150, %v2143, %v2147
  %v2152 = vand.u32 2147483647, %v2073
  %vm2153 = vcmp.eq.f32.partialorder %v2152, 8.507059e+37
  %v2154 = vand.u32 %v2073, 2147483648
  %v2155 = vor.u32 1.1754944e-38, %v2154
  %v2156 = vsel %vm2153, %v2155, %v2151
  %v2157 = vmul.f32 %v2052, %v2156
  %v2158 = vrcp.pop %v2076
  %v2159 = vmul.f32 %v2076, %v2158
  %v2160 = vsub.f32 1.0, %v2159
  %v2161 = vmul.f32 %v2158, %v2160
  %v2162 = vadd.f32 %v2158, %v2161
  %vm2163 = vweird.f32 %v2076
  %vm2164 = vweird.f32 %v2158
  %vm2165 = vmor %vm2163, %vm2164
  %v2166 = vsel %vm2165, %v2158, %v2162
  %v2167 = vand.u32 2147483647, %v2076
  %vm2168 = vcmp.eq.f32.partialorder %v2167, 8.507059e+37
  %v2169 = vand.u32 %v2076, 2147483648
  %v2170 = vor.u32 1.1754944e-38, %v2169
  %v2171 = vsel %vm2168, %v2170, %v2166
  %v2172 = vmul.f32 %v2054, %v2171
  %v2173 = vrcp.pop %v2079
  %v2174 = vmul.f32 %v2079, %v2173
  %v2175 = vsub.f32 1.0, %v2174
  %v2176 = vmul.f32 %v2173, %v2175
  %v2177 = vadd.f32 %v2173, %v2176
  %vm2178 = vweird.f32 %v2079
  %vm2179 = vweird.f32 %v2173
  %vm2180 = vmor %vm2178, %vm2179
  %v2181 = vsel %vm2180, %v2173, %v2177
  %v2182 = vand.u32 2147483647, %v2079
  %vm2183 = vcmp.eq.f32.partialorder %v2182, 8.507059e+37
  %v2184 = vand.u32 %v2079, 2147483648
  %v2185 = vor.u32 1.1754944e-38, %v2184
  %v2186 = vsel %vm2183, %v2185, %v2181
  %v2187 = vmul.f32 %v2056, %v2186
  %v2188 = vrcp.pop %v2082
  %v2189 = vmul.f32 %v2082, %v2188
  %v2190 = vsub.f32 1.0, %v2189
  %v2191 = vmul.f32 %v2188, %v2190
  %v2192 = vadd.f32 %v2188, %v2191
  %vm2193 = vweird.f32 %v2082
  %vm2194 = vweird.f32 %v2188
  %vm2195 = vmor %vm2193, %vm2194
  %v2196 = vsel %vm2195, %v2188, %v2192
  %v2197 = vand.u32 2147483647, %v2082
  %vm2198 = vcmp.eq.f32.partialorder %v2197, 8.507059e+37
  %v2199 = vand.u32 %v2082, 2147483648
  %v2200 = vor.u32 1.1754944e-38, %v2199
  %v2201 = vsel %vm2198, %v2200, %v2196
  %v2202 = vmul.f32 %v2058, %v2201
  %2211 = vrot.lane.b32.xlu0 %v1658, 96
  %v2212 = vpop.permute.xlu0 %2211
  %2213 = vrot.lane.b32.xlu0 %v1661, 96
  %v2214 = vpop.permute.xlu0 %2213
  %2215 = vrot.lane.b32.xlu0 %v1664, 96
  %v2216 = vpop.permute.xlu0 %2215
  %2217 = vrot.lane.b32.xlu0 %v1667, 96
  %v2218 = vpop.permute.xlu0 %2217
  %2219 = vrot.lane.b32.xlu0 %v1670, 96
  %v2220 = vpop.permute.xlu0 %2219
  %2221 = vrot.lane.b32.xlu0 %v1673, 96
  %v2222 = vpop.permute.xlu0 %2221
  %2223 = vrot.lane.b32.xlu0 %v1676, 96
  %v2224 = vpop.permute.xlu0 %2223
  %2225 = vrot.lane.b32.xlu0 %v1679, 96
  %v2226 = vpop.permute.xlu0 %2225
  %v2236 = vsel %vm203, %v2097, 0
  %v2239 = vsel %vm203, %v2112, 0
  %v2242 = vsel %vm203, %v2127, 0
  %v2245 = vsel %vm203, %v2142, 0
  %v2248 = vsel %vm203, %v2157, 0
  %v2251 = vsel %vm203, %v2172, 0
  %v2254 = vsel %vm203, %v2187, 0
  %v2257 = vsel %vm203, %v2202, 0
  %2259 = vmatpush.msra.mxu0 0.0
  %2260 = vmatpush.msra.mxu0 0.0
  %2261 = vmatpush.msra.mxu0 0.0
  %2262 = vmatpush.msra.mxu0 0.0
  %2263 = vmatpush.msra.mxu0 0.0
  %2264 = vmatpush.msra.mxu0 0.0
  %2265 = vmatpush.msra.mxu0 0.0
  %2266 = vmatpush.msra.mxu0 0.0
  %2267 = vmatpush.msra.mxu0 %v2226
  %2268 = vmatpush.msra.mxu0 %v2224
  %2269 = vmatpush.msra.mxu0 %v2222
  %2270 = vmatpush.msra.mxu0 %v2220
  %2271 = vmatpush.msra.mxu0 %v2218
  %2272 = vmatpush.msra.mxu0 %v2216
  %2273 = vmatpush.msra.mxu0 %v2214
  %2274 = vmatpush.msra.mxu0 %v2212
  %2275 = vmatmul.f32.gmra.mxu0 %v2236
  %v2276 = vpop.f32.mrf.mxu0
  %v2277 = vadd.f32 0.0, %v2276
  %2278 = vmatmul.f32.gmra.mxu0 %v2239
  %v2279 = vpop.f32.mrf.mxu0
  %v2280 = vadd.f32 0.0, %v2279
  %2281 = vmatmul.f32.gmra.mxu0 %v2242
  %v2282 = vpop.f32.mrf.mxu0
  %v2283 = vadd.f32 0.0, %v2282
  %2284 = vmatmul.f32.gmra.mxu0 %v2245
  %v2285 = vpop.f32.mrf.mxu0
  %v2286 = vadd.f32 0.0, %v2285
  %2287 = vmatmul.f32.gmra.mxu0 %v2248
  %v2288 = vpop.f32.mrf.mxu0
  %v2289 = vadd.f32 0.0, %v2288
  %2290 = vmatmul.f32.gmra.mxu0 %v2251
  %v2291 = vpop.f32.mrf.mxu0
  %v2292 = vadd.f32 0.0, %v2291
  %2293 = vmatmul.f32.gmra.mxu0 %v2254
  %v2294 = vpop.f32.mrf.mxu0
  %v2295 = vadd.f32 0.0, %v2294
  %2296 = vmatmul.f32.gmra.mxu0 %v2257
  %v2297 = vpop.f32.mrf.mxu0
  %v2298 = vadd.f32 0.0, %v2297
  %2299 = vdwg.mxu0
  %v2301 = vsel %vm203, %v1832, 0
  %v2304 = vsel %vm203, %v1847, 0
  %v2307 = vsel %vm203, %v1862, 0
  %v2310 = vsel %vm203, %v1877, 0
  %v2313 = vsel %vm203, %v1892, 0
  %v2316 = vsel %vm203, %v1907, 0
  %v2319 = vsel %vm203, %v1922, 0
  %v2322 = vsel %vm203, %v1937, 0
  %2324 = vmatpush.msra.mxu0 0.0
  %2325 = vmatpush.msra.mxu0 0.0
  %2326 = vmatpush.msra.mxu0 0.0
  %2327 = vmatpush.msra.mxu0 0.0
  %2328 = vmatpush.msra.mxu0 0.0
  %2329 = vmatpush.msra.mxu0 0.0
  %2330 = vmatpush.msra.mxu0 0.0
  %2331 = vmatpush.msra.mxu0 0.0
  %2332 = vmatpush.msra.mxu0 %v1679
  %2333 = vmatpush.msra.mxu0 %v1676
  %2334 = vmatpush.msra.mxu0 %v1673
  %2335 = vmatpush.msra.mxu0 %v1670
  %2336 = vmatpush.msra.mxu0 %v1667
  %2337 = vmatpush.msra.mxu0 %v1664
  %2338 = vmatpush.msra.mxu0 %v1661
  %2339 = vmatpush.msra.mxu0 %v1658
  %2340 = vmatmul.f32.gmra.mxu0 %v2301
  %v2341 = vpop.f32.mrf.mxu0
  %v2342 = vadd.f32 %v2277, %v2341
  %2343 = vmatmul.f32.gmra.mxu0 %v2304
  %v2344 = vpop.f32.mrf.mxu0
  %v2345 = vadd.f32 %v2280, %v2344
  %2346 = vmatmul.f32.gmra.mxu0 %v2307
  %v2347 = vpop.f32.mrf.mxu0
  %v2348 = vadd.f32 %v2283, %v2347
  %2349 = vmatmul.f32.gmra.mxu0 %v2310
  %v2350 = vpop.f32.mrf.mxu0
  %v2351 = vadd.f32 %v2286, %v2350
  %2352 = vmatmul.f32.gmra.mxu0 %v2313
  %v2353 = vpop.f32.mrf.mxu0
  %v2354 = vadd.f32 %v2289, %v2353
  %2355 = vmatmul.f32.gmra.mxu0 %v2316
  %v2356 = vpop.f32.mrf.mxu0
  %v2357 = vadd.f32 %v2292, %v2356
  %2358 = vmatmul.f32.gmra.mxu0 %v2319
  %v2359 = vpop.f32.mrf.mxu0
  %v2360 = vadd.f32 %v2295, %v2359
  %2361 = vmatmul.f32.gmra.mxu0 %v2322
  %v2362 = vpop.f32.mrf.mxu0
  %v2363 = vadd.f32 %v2298, %v2362
  %2364 = vdwg.mxu0
  %2365 = vrot.lane.b32.xlu0 %v1617, 64
  %v2366 = vpop.permute.xlu0 %2365
  %2367 = vrot.lane.b32.xlu0 %v1620, 64
  %v2368 = vpop.permute.xlu0 %2367
  %2369 = vrot.lane.b32.xlu0 %v1623, 64
  %v2370 = vpop.permute.xlu0 %2369
  %2371 = vrot.lane.b32.xlu0 %v1626, 64
  %v2372 = vpop.permute.xlu0 %2371
  %2373 = vrot.lane.b32.xlu0 %v1629, 64
  %v2374 = vpop.permute.xlu0 %2373
  %2375 = vrot.lane.b32.xlu0 %v1632, 64
  %v2376 = vpop.permute.xlu0 %2375
  %2377 = vrot.lane.b32.xlu0 %v1635, 64
  %v2378 = vpop.permute.xlu0 %2377
  %2379 = vrot.lane.b32.xlu0 %v1638, 64
  %v2380 = vpop.permute.xlu0 %2379
  %v2381 = vsel %vm31, %v2366, 0
  %v2383 = vsel %vm31, %v2368, 0
  %v2385 = vsel %vm31, %v2370, 0
  %v2387 = vsel %vm31, %v2372, 0
  %v2389 = vsel %vm31, %v2374, 0
  %v2391 = vsel %vm31, %v2376, 0
  %v2393 = vsel %vm31, %v2378, 0
  %v2395 = vsel %vm31, %v2380, 0
  %2397 = vmatpush.xpose.msra.mxu0 0.0
  %2398 = vmatpush.xpose.msra.mxu0 0.0
  %2399 = vmatpush.xpose.msra.mxu0 0.0
  %2400 = vmatpush.xpose.msra.mxu0 0.0
  %2401 = vmatpush.xpose.msra.mxu0 0.0
  %2402 = vmatpush.xpose.msra.mxu0 0.0
  %2403 = vmatpush.xpose.msra.mxu0 0.0
  %2404 = vmatpush.xpose.msra.mxu0 0.0
  %2405 = vmatpush.xpose.msra.mxu0 %v1597
  %2406 = vmatpush.xpose.msra.mxu0 %v1594
  %2407 = vmatpush.xpose.msra.mxu0 %v1591
  %2408 = vmatpush.xpose.msra.mxu0 %v1588
  %2409 = vmatpush.xpose.msra.mxu0 %v1585
  %2410 = vmatpush.xpose.msra.mxu0 %v1582
  %2411 = vmatpush.xpose.msra.mxu0 %v1579
  %2412 = vmatpush.xpose.msra.mxu0 %v1576
  %2413 = vmatmul.f32.gmra.mxu0 %v2381
  %v2414 = vpop.f32.mrf.mxu0
  %v2415 = vadd.f32 0.0, %v2414
  %2416 = vmatmul.f32.gmra.mxu0 %v2383
  %v2417 = vpop.f32.mrf.mxu0
  %v2418 = vadd.f32 0.0, %v2417
  %2419 = vmatmul.f32.gmra.mxu0 %v2385
  %v2420 = vpop.f32.mrf.mxu0
  %v2421 = vadd.f32 0.0, %v2420
  %2422 = vmatmul.f32.gmra.mxu0 %v2387
  %v2423 = vpop.f32.mrf.mxu0
  %v2424 = vadd.f32 0.0, %v2423
  %2425 = vmatmul.f32.gmra.mxu0 %v2389
  %v2426 = vpop.f32.mrf.mxu0
  %v2427 = vadd.f32 0.0, %v2426
  %2428 = vmatmul.f32.gmra.mxu0 %v2391
  %v2429 = vpop.f32.mrf.mxu0
  %v2430 = vadd.f32 0.0, %v2429
  %2431 = vmatmul.f32.gmra.mxu0 %v2393
  %v2432 = vpop.f32.mrf.mxu0
  %v2433 = vadd.f32 0.0, %v2432
  %2434 = vmatmul.f32.gmra.mxu0 %v2395
  %v2435 = vpop.f32.mrf.mxu0
  %v2436 = vadd.f32 0.0, %v2435
  %2437 = vdwg.mxu0
  %v2438 = vsel %vm203, %v2415, -inf
  %2439 = vmax.xlane.f32.xlu0 %v2438
  %v2440 = vpop.xlane.xlu0 %2439
  %v2441 = vsel %vm203, %v2418, -inf
  %2442 = vmax.xlane.f32.xlu0 %v2441
  %v2443 = vpop.xlane.xlu0 %2442
  %v2444 = vsel %vm203, %v2421, -inf
  %2445 = vmax.xlane.f32.xlu0 %v2444
  %v2446 = vpop.xlane.xlu0 %2445
  %v2447 = vsel %vm203, %v2424, -inf
  %2448 = vmax.xlane.f32.xlu0 %v2447
  %v2449 = vpop.xlane.xlu0 %2448
  %v2450 = vsel %vm203, %v2427, -inf
  %2451 = vmax.xlane.f32.xlu0 %v2450
  %v2452 = vpop.xlane.xlu0 %2451
  %v2453 = vsel %vm203, %v2430, -inf
  %2454 = vmax.xlane.f32.xlu0 %v2453
  %v2455 = vpop.xlane.xlu0 %2454
  %v2456 = vsel %vm203, %v2433, -inf
  %2457 = vmax.xlane.f32.xlu0 %v2456
  %v2458 = vpop.xlane.xlu0 %2457
  %v2459 = vsel %vm203, %v2436, -inf
  %2460 = vmax.xlane.f32.xlu0 %v2459
  %v2461 = vpop.xlane.xlu0 %2460
  %v2462 = vsub.f32 %v2415, %v2440
  %v2463 = vsub.f32 %v2418, %v2443
  %v2464 = vsub.f32 %v2421, %v2446
  %v2465 = vsub.f32 %v2424, %v2449
  %v2466 = vsub.f32 %v2427, %v2452
  %v2467 = vsub.f32 %v2430, %v2455
  %v2468 = vsub.f32 %v2433, %v2458
  %v2469 = vsub.f32 %v2436, %v2461
  %v2470 = vmul.f32 %v2462, 1.442695
  %v2471 = vpow.pop %v2470
  %v2472 = vmul.f32 %v2463, 1.442695
  %v2473 = vpow.pop %v2472
  %v2474 = vmul.f32 %v2464, 1.442695
  %v2475 = vpow.pop %v2474
  %v2476 = vmul.f32 %v2465, 1.442695
  %v2477 = vpow.pop %v2476
  %v2478 = vmul.f32 %v2466, 1.442695
  %v2479 = vpow.pop %v2478
  %v2480 = vmul.f32 %v2467, 1.442695
  %v2481 = vpow.pop %v2480
  %v2482 = vmul.f32 %v2468, 1.442695
  %v2483 = vpow.pop %v2482
  %v2484 = vmul.f32 %v2469, 1.442695
  %v2485 = vpow.pop %v2484
  %v2486 = vsel %vm203, %v2471, 0.0
  %2487 = vadd.xlane.f32.xlu0 %v2486
  %v2488 = vpop.xlane.xlu0 %2487
  %v2489 = vsel %vm203, %v2473, 0.0
  %2490 = vadd.xlane.f32.xlu0 %v2489
  %v2491 = vpop.xlane.xlu0 %2490
  %v2492 = vsel %vm203, %v2475, 0.0
  %2493 = vadd.xlane.f32.xlu0 %v2492
  %v2494 = vpop.xlane.xlu0 %2493
  %v2495 = vsel %vm203, %v2477, 0.0
  %2496 = vadd.xlane.f32.xlu0 %v2495
  %v2497 = vpop.xlane.xlu0 %2496
  %v2498 = vsel %vm203, %v2479, 0.0
  %2499 = vadd.xlane.f32.xlu0 %v2498
  %v2500 = vpop.xlane.xlu0 %2499
  %v2501 = vsel %vm203, %v2481, 0.0
  %2502 = vadd.xlane.f32.xlu0 %v2501
  %v2503 = vpop.xlane.xlu0 %2502
  %v2504 = vsel %vm203, %v2483, 0.0
  %2505 = vadd.xlane.f32.xlu0 %v2504
  %v2506 = vpop.xlane.xlu0 %2505
  %v2507 = vsel %vm203, %v2485, 0.0
  %2508 = vadd.xlane.f32.xlu0 %v2507
  %v2509 = vpop.xlane.xlu0 %2508
  %v2510 = vrcp.pop %v2488
  %v2511 = vmul.f32 %v2488, %v2510
  %v2512 = vsub.f32 1.0, %v2511
  %v2513 = vmul.f32 %v2510, %v2512
  %v2514 = vadd.f32 %v2510, %v2513
  %vm2515 = vweird.f32 %v2488
  %vm2516 = vweird.f32 %v2510
  %vm2517 = vmor %vm2515, %vm2516
  %v2518 = vsel %vm2517, %v2510, %v2514
  %v2519 = vand.u32 2147483647, %v2488
  %vm2520 = vcmp.eq.f32.partialorder %v2519, 8.507059e+37
  %v2521 = vand.u32 %v2488, 2147483648
  %v2522 = vor.u32 1.1754944e-38, %v2521
  %v2523 = vsel %vm2520, %v2522, %v2518
  %v2524 = vmul.f32 %v2471, %v2523
  %v2525 = vrcp.pop %v2491
  %v2526 = vmul.f32 %v2491, %v2525
  %v2527 = vsub.f32 1.0, %v2526
  %v2528 = vmul.f32 %v2525, %v2527
  %v2529 = vadd.f32 %v2525, %v2528
  %vm2530 = vweird.f32 %v2491
  %vm2531 = vweird.f32 %v2525
  %vm2532 = vmor %vm2530, %vm2531
  %v2533 = vsel %vm2532, %v2525, %v2529
  %v2534 = vand.u32 2147483647, %v2491
  %vm2535 = vcmp.eq.f32.partialorder %v2534, 8.507059e+37
  %v2536 = vand.u32 %v2491, 2147483648
  %v2537 = vor.u32 1.1754944e-38, %v2536
  %v2538 = vsel %vm2535, %v2537, %v2533
  %v2539 = vmul.f32 %v2473, %v2538
  %v2540 = vrcp.pop %v2494
  %v2541 = vmul.f32 %v2494, %v2540
  %v2542 = vsub.f32 1.0, %v2541
  %v2543 = vmul.f32 %v2540, %v2542
  %v2544 = vadd.f32 %v2540, %v2543
  %vm2545 = vweird.f32 %v2494
  %vm2546 = vweird.f32 %v2540
  %vm2547 = vmor %vm2545, %vm2546
  %v2548 = vsel %vm2547, %v2540, %v2544
  %v2549 = vand.u32 2147483647, %v2494
  %vm2550 = vcmp.eq.f32.partialorder %v2549, 8.507059e+37
  %v2551 = vand.u32 %v2494, 2147483648
  %v2552 = vor.u32 1.1754944e-38, %v2551
  %v2553 = vsel %vm2550, %v2552, %v2548
  %v2554 = vmul.f32 %v2475, %v2553
  %v2555 = vrcp.pop %v2497
  %v2556 = vmul.f32 %v2497, %v2555
  %v2557 = vsub.f32 1.0, %v2556
  %v2558 = vmul.f32 %v2555, %v2557
  %v2559 = vadd.f32 %v2555, %v2558
  %vm2560 = vweird.f32 %v2497
  %vm2561 = vweird.f32 %v2555
  %vm2562 = vmor %vm2560, %vm2561
  %v2563 = vsel %vm2562, %v2555, %v2559
  %v2564 = vand.u32 2147483647, %v2497
  %vm2565 = vcmp.eq.f32.partialorder %v2564, 8.507059e+37
  %v2566 = vand.u32 %v2497, 2147483648
  %v2567 = vor.u32 1.1754944e-38, %v2566
  %v2568 = vsel %vm2565, %v2567, %v2563
  %v2569 = vmul.f32 %v2477, %v2568
  %v2570 = vrcp.pop %v2500
  %v2571 = vmul.f32 %v2500, %v2570
  %v2572 = vsub.f32 1.0, %v2571
  %v2573 = vmul.f32 %v2570, %v2572
  %v2574 = vadd.f32 %v2570, %v2573
  %vm2575 = vweird.f32 %v2500
  %vm2576 = vweird.f32 %v2570
  %vm2577 = vmor %vm2575, %vm2576
  %v2578 = vsel %vm2577, %v2570, %v2574
  %v2579 = vand.u32 2147483647, %v2500
  %vm2580 = vcmp.eq.f32.partialorder %v2579, 8.507059e+37
  %v2581 = vand.u32 %v2500, 2147483648
  %v2582 = vor.u32 1.1754944e-38, %v2581
  %v2583 = vsel %vm2580, %v2582, %v2578
  %v2584 = vmul.f32 %v2479, %v2583
  %v2585 = vrcp.pop %v2503
  %v2586 = vmul.f32 %v2503, %v2585
  %v2587 = vsub.f32 1.0, %v2586
  %v2588 = vmul.f32 %v2585, %v2587
  %v2589 = vadd.f32 %v2585, %v2588
  %vm2590 = vweird.f32 %v2503
  %vm2591 = vweird.f32 %v2585
  %vm2592 = vmor %vm2590, %vm2591
  %v2593 = vsel %vm2592, %v2585, %v2589
  %v2594 = vand.u32 2147483647, %v2503
  %vm2595 = vcmp.eq.f32.partialorder %v2594, 8.507059e+37
  %v2596 = vand.u32 %v2503, 2147483648
  %v2597 = vor.u32 1.1754944e-38, %v2596
  %v2598 = vsel %vm2595, %v2597, %v2593
  %v2599 = vmul.f32 %v2481, %v2598
  %v2600 = vrcp.pop %v2506
  %v2601 = vmul.f32 %v2506, %v2600
  %v2602 = vsub.f32 1.0, %v2601
  %v2603 = vmul.f32 %v2600, %v2602
  %v2604 = vadd.f32 %v2600, %v2603
  %vm2605 = vweird.f32 %v2506
  %vm2606 = vweird.f32 %v2600
  %vm2607 = vmor %vm2605, %vm2606
  %v2608 = vsel %vm2607, %v2600, %v2604
  %v2609 = vand.u32 2147483647, %v2506
  %vm2610 = vcmp.eq.f32.partialorder %v2609, 8.507059e+37
  %v2611 = vand.u32 %v2506, 2147483648
  %v2612 = vor.u32 1.1754944e-38, %v2611
  %v2613 = vsel %vm2610, %v2612, %v2608
  %v2614 = vmul.f32 %v2483, %v2613
  %v2615 = vrcp.pop %v2509
  %v2616 = vmul.f32 %v2509, %v2615
  %v2617 = vsub.f32 1.0, %v2616
  %v2618 = vmul.f32 %v2615, %v2617
  %v2619 = vadd.f32 %v2615, %v2618
  %vm2620 = vweird.f32 %v2509
  %vm2621 = vweird.f32 %v2615
  %vm2622 = vmor %vm2620, %vm2621
  %v2623 = vsel %vm2622, %v2615, %v2619
  %v2624 = vand.u32 2147483647, %v2509
  %vm2625 = vcmp.eq.f32.partialorder %v2624, 8.507059e+37
  %v2626 = vand.u32 %v2509, 2147483648
  %v2627 = vor.u32 1.1754944e-38, %v2626
  %v2628 = vsel %vm2625, %v2627, %v2623
  %v2629 = vmul.f32 %v2485, %v2628
  %2630 = vrot.lane.b32.xlu0 %v1658, 64
  %v2631 = vpop.permute.xlu0 %2630
  %2632 = vrot.lane.b32.xlu0 %v1661, 64
  %v2633 = vpop.permute.xlu0 %2632
  %2634 = vrot.lane.b32.xlu0 %v1664, 64
  %v2635 = vpop.permute.xlu0 %2634
  %2636 = vrot.lane.b32.xlu0 %v1667, 64
  %v2637 = vpop.permute.xlu0 %2636
  %2638 = vrot.lane.b32.xlu0 %v1670, 64
  %v2639 = vpop.permute.xlu0 %2638
  %2640 = vrot.lane.b32.xlu0 %v1673, 64
  %v2641 = vpop.permute.xlu0 %2640
  %2642 = vrot.lane.b32.xlu0 %v1676, 64
  %v2643 = vpop.permute.xlu0 %2642
  %2644 = vrot.lane.b32.xlu0 %v1679, 64
  %v2645 = vpop.permute.xlu0 %2644
  %v2655 = vsel %vm203, %v2524, 0
  %v2658 = vsel %vm203, %v2539, 0
  %v2661 = vsel %vm203, %v2554, 0
  %v2664 = vsel %vm203, %v2569, 0
  %v2667 = vsel %vm203, %v2584, 0
  %v2670 = vsel %vm203, %v2599, 0
  %v2673 = vsel %vm203, %v2614, 0
  %v2676 = vsel %vm203, %v2629, 0
  %2678 = vmatpush.msra.mxu0 0.0
  %2679 = vmatpush.msra.mxu0 0.0
  %2680 = vmatpush.msra.mxu0 0.0
  %2681 = vmatpush.msra.mxu0 0.0
  %2682 = vmatpush.msra.mxu0 0.0
  %2683 = vmatpush.msra.mxu0 0.0
  %2684 = vmatpush.msra.mxu0 0.0
  %2685 = vmatpush.msra.mxu0 0.0
  %2686 = vmatpush.msra.mxu0 %v2645
  %2687 = vmatpush.msra.mxu0 %v2643
  %2688 = vmatpush.msra.mxu0 %v2641
  %2689 = vmatpush.msra.mxu0 %v2639
  %2690 = vmatpush.msra.mxu0 %v2637
  %2691 = vmatpush.msra.mxu0 %v2635
  %2692 = vmatpush.msra.mxu0 %v2633
  %2693 = vmatpush.msra.mxu0 %v2631
  %2694 = vmatmul.f32.gmra.mxu0 %v2655
  %v2695 = vpop.f32.mrf.mxu0
  %v2696 = vadd.f32 0.0, %v2695
  %2697 = vmatmul.f32.gmra.mxu0 %v2658
  %v2698 = vpop.f32.mrf.mxu0
  %v2699 = vadd.f32 0.0, %v2698
  %2700 = vmatmul.f32.gmra.mxu0 %v2661
  %v2701 = vpop.f32.mrf.mxu0
  %v2702 = vadd.f32 0.0, %v2701
  %2703 = vmatmul.f32.gmra.mxu0 %v2664
  %v2704 = vpop.f32.mrf.mxu0
  %v2705 = vadd.f32 0.0, %v2704
  %2706 = vmatmul.f32.gmra.mxu0 %v2667
  %v2707 = vpop.f32.mrf.mxu0
  %v2708 = vadd.f32 0.0, %v2707
  %2709 = vmatmul.f32.gmra.mxu0 %v2670
  %v2710 = vpop.f32.mrf.mxu0
  %v2711 = vadd.f32 0.0, %v2710
  %2712 = vmatmul.f32.gmra.mxu0 %v2673
  %v2713 = vpop.f32.mrf.mxu0
  %v2714 = vadd.f32 0.0, %v2713
  %2715 = vmatmul.f32.gmra.mxu0 %v2676
  %v2716 = vpop.f32.mrf.mxu0
  %v2717 = vadd.f32 0.0, %v2716
  %2718 = vdwg.mxu0
  %v2719 = vadd.f32 %v2342, %v2696
  %v2720 = vadd.f32 %v2345, %v2699
  %v2721 = vadd.f32 %v2348, %v2702
  %v2722 = vadd.f32 %v2351, %v2705
  %v2723 = vadd.f32 %v2354, %v2708
  %v2724 = vadd.f32 %v2357, %v2711
  %v2725 = vadd.f32 %v2360, %v2714
  %v2726 = vadd.f32 %v2363, %v2717
  %2727 = vrot.lane.b32.xlu0 %v1617, 32
  %v2728 = vpop.permute.xlu0 %2727
  %2729 = vrot.lane.b32.xlu0 %v1620, 32
  %v2730 = vpop.permute.xlu0 %2729
  %2731 = vrot.lane.b32.xlu0 %v1623, 32
  %v2732 = vpop.permute.xlu0 %2731
  %2733 = vrot.lane.b32.xlu0 %v1626, 32
  %v2734 = vpop.permute.xlu0 %2733
  %2735 = vrot.lane.b32.xlu0 %v1629, 32
  %v2736 = vpop.permute.xlu0 %2735
  %2737 = vrot.lane.b32.xlu0 %v1632, 32
  %v2738 = vpop.permute.xlu0 %2737
  %2739 = vrot.lane.b32.xlu0 %v1635, 32
  %v2740 = vpop.permute.xlu0 %2739
  %2741 = vrot.lane.b32.xlu0 %v1638, 32
  %v2742 = vpop.permute.xlu0 %2741
  %v2743 = vsel %vm31, %v2728, 0
  %v2745 = vsel %vm31, %v2730, 0
  %v2747 = vsel %vm31, %v2732, 0
  %v2749 = vsel %vm31, %v2734, 0
  %v2751 = vsel %vm31, %v2736, 0
  %v2753 = vsel %vm31, %v2738, 0
  %v2755 = vsel %vm31, %v2740, 0
  %v2757 = vsel %vm31, %v2742, 0
  %2759 = vmatpush.xpose.msra.mxu0 0.0
  %2760 = vmatpush.xpose.msra.mxu0 0.0
  %2761 = vmatpush.xpose.msra.mxu0 0.0
  %2762 = vmatpush.xpose.msra.mxu0 0.0
  %2763 = vmatpush.xpose.msra.mxu0 0.0
  %2764 = vmatpush.xpose.msra.mxu0 0.0
  %2765 = vmatpush.xpose.msra.mxu0 0.0
  %2766 = vmatpush.xpose.msra.mxu0 0.0
  %2767 = vmatpush.xpose.msra.mxu0 %v1597
  %2768 = vmatpush.xpose.msra.mxu0 %v1594
  %2769 = vmatpush.xpose.msra.mxu0 %v1591
  %2770 = vmatpush.xpose.msra.mxu0 %v1588
  %2771 = vmatpush.xpose.msra.mxu0 %v1585
  %2772 = vmatpush.xpose.msra.mxu0 %v1582
  %2773 = vmatpush.xpose.msra.mxu0 %v1579
  %2774 = vmatpush.xpose.msra.mxu0 %v1576
  %2775 = vmatmul.f32.gmra.mxu0 %v2743
  %v2776 = vpop.f32.mrf.mxu0
  %v2777 = vadd.f32 0.0, %v2776
  %2778 = vmatmul.f32.gmra.mxu0 %v2745
  %v2779 = vpop.f32.mrf.mxu0
  %v2780 = vadd.f32 0.0, %v2779
  %2781 = vmatmul.f32.gmra.mxu0 %v2747
  %v2782 = vpop.f32.mrf.mxu0
  %v2783 = vadd.f32 0.0, %v2782
  %2784 = vmatmul.f32.gmra.mxu0 %v2749
  %v2785 = vpop.f32.mrf.mxu0
  %v2786 = vadd.f32 0.0, %v2785
  %2787 = vmatmul.f32.gmra.mxu0 %v2751
  %v2788 = vpop.f32.mrf.mxu0
  %v2789 = vadd.f32 0.0, %v2788
  %2790 = vmatmul.f32.gmra.mxu0 %v2753
  %v2791 = vpop.f32.mrf.mxu0
  %v2792 = vadd.f32 0.0, %v2791
  %2793 = vmatmul.f32.gmra.mxu0 %v2755
  %v2794 = vpop.f32.mrf.mxu0
  %v2795 = vadd.f32 0.0, %v2794
  %2796 = vmatmul.f32.gmra.mxu0 %v2757
  %v2797 = vpop.f32.mrf.mxu0
  %v2798 = vadd.f32 0.0, %v2797
  %2799 = vdwg.mxu0
  %v2800 = vsel %vm203, %v2777, -inf
  %2801 = vmax.xlane.f32.xlu0 %v2800
  %v2802 = vpop.xlane.xlu0 %2801
  %v2803 = vsel %vm203, %v2780, -inf
  %2804 = vmax.xlane.f32.xlu0 %v2803
  %v2805 = vpop.xlane.xlu0 %2804
  %v2806 = vsel %vm203, %v2783, -inf
  %2807 = vmax.xlane.f32.xlu0 %v2806
  %v2808 = vpop.xlane.xlu0 %2807
  %v2809 = vsel %vm203, %v2786, -inf
  %2810 = vmax.xlane.f32.xlu0 %v2809
  %v2811 = vpop.xlane.xlu0 %2810
  %v2812 = vsel %vm203, %v2789, -inf
  %2813 = vmax.xlane.f32.xlu0 %v2812
  %v2814 = vpop.xlane.xlu0 %2813
  %v2815 = vsel %vm203, %v2792, -inf
  %2816 = vmax.xlane.f32.xlu0 %v2815
  %v2817 = vpop.xlane.xlu0 %2816
  %v2818 = vsel %vm203, %v2795, -inf
  %2819 = vmax.xlane.f32.xlu0 %v2818
  %v2820 = vpop.xlane.xlu0 %2819
  %v2821 = vsel %vm203, %v2798, -inf
  %2822 = vmax.xlane.f32.xlu0 %v2821
  %v2823 = vpop.xlane.xlu0 %2822
  %v2824 = vsub.f32 %v2777, %v2802
  %v2825 = vsub.f32 %v2780, %v2805
  %v2826 = vsub.f32 %v2783, %v2808
  %v2827 = vsub.f32 %v2786, %v2811
  %v2828 = vsub.f32 %v2789, %v2814
  %v2829 = vsub.f32 %v2792, %v2817
  %v2830 = vsub.f32 %v2795, %v2820
  %v2831 = vsub.f32 %v2798, %v2823
  %v2832 = vmul.f32 %v2824, 1.442695
  %v2833 = vpow.pop %v2832
  %v2834 = vmul.f32 %v2825, 1.442695
  %v2835 = vpow.pop %v2834
  %v2836 = vmul.f32 %v2826, 1.442695
  %v2837 = vpow.pop %v2836
  %v2838 = vmul.f32 %v2827, 1.442695
  %v2839 = vpow.pop %v2838
  %v2840 = vmul.f32 %v2828, 1.442695
  %v2841 = vpow.pop %v2840
  %v2842 = vmul.f32 %v2829, 1.442695
  %v2843 = vpow.pop %v2842
  %v2844 = vmul.f32 %v2830, 1.442695
  %v2845 = vpow.pop %v2844
  %v2846 = vmul.f32 %v2831, 1.442695
  %v2847 = vpow.pop %v2846
  %v2848 = vsel %vm203, %v2833, 0.0
  %2849 = vadd.xlane.f32.xlu0 %v2848
  %v2850 = vpop.xlane.xlu0 %2849
  %v2851 = vsel %vm203, %v2835, 0.0
  %2852 = vadd.xlane.f32.xlu0 %v2851
  %v2853 = vpop.xlane.xlu0 %2852
  %v2854 = vsel %vm203, %v2837, 0.0
  %2855 = vadd.xlane.f32.xlu0 %v2854
  %v2856 = vpop.xlane.xlu0 %2855
  %v2857 = vsel %vm203, %v2839, 0.0
  %2858 = vadd.xlane.f32.xlu0 %v2857
  %v2859 = vpop.xlane.xlu0 %2858
  %v2860 = vsel %vm203, %v2841, 0.0
  %2861 = vadd.xlane.f32.xlu0 %v2860
  %v2862 = vpop.xlane.xlu0 %2861
  %v2863 = vsel %vm203, %v2843, 0.0
  %2864 = vadd.xlane.f32.xlu0 %v2863
  %v2865 = vpop.xlane.xlu0 %2864
  %v2866 = vsel %vm203, %v2845, 0.0
  %2867 = vadd.xlane.f32.xlu0 %v2866
  %v2868 = vpop.xlane.xlu0 %2867
  %v2869 = vsel %vm203, %v2847, 0.0
  %2870 = vadd.xlane.f32.xlu0 %v2869
  %v2871 = vpop.xlane.xlu0 %2870
  %v2872 = vrcp.pop %v2850
  %v2873 = vmul.f32 %v2850, %v2872
  %v2874 = vsub.f32 1.0, %v2873
  %v2875 = vmul.f32 %v2872, %v2874
  %v2876 = vadd.f32 %v2872, %v2875
  %vm2877 = vweird.f32 %v2850
  %vm2878 = vweird.f32 %v2872
  %vm2879 = vmor %vm2877, %vm2878
  %v2880 = vsel %vm2879, %v2872, %v2876
  %v2881 = vand.u32 2147483647, %v2850
  %vm2882 = vcmp.eq.f32.partialorder %v2881, 8.507059e+37
  %v2883 = vand.u32 %v2850, 2147483648
  %v2884 = vor.u32 1.1754944e-38, %v2883
  %v2885 = vsel %vm2882, %v2884, %v2880
  %v2886 = vmul.f32 %v2833, %v2885
  %v2887 = vrcp.pop %v2853
  %v2888 = vmul.f32 %v2853, %v2887
  %v2889 = vsub.f32 1.0, %v2888
  %v2890 = vmul.f32 %v2887, %v2889
  %v2891 = vadd.f32 %v2887, %v2890
  %vm2892 = vweird.f32 %v2853
  %vm2893 = vweird.f32 %v2887
  %vm2894 = vmor %vm2892, %vm2893
  %v2895 = vsel %vm2894, %v2887, %v2891
  %v2896 = vand.u32 2147483647, %v2853
  %vm2897 = vcmp.eq.f32.partialorder %v2896, 8.507059e+37
  %v2898 = vand.u32 %v2853, 2147483648
  %v2899 = vor.u32 1.1754944e-38, %v2898
  %v2900 = vsel %vm2897, %v2899, %v2895
  %v2901 = vmul.f32 %v2835, %v2900
  %v2902 = vrcp.pop %v2856
  %v2903 = vmul.f32 %v2856, %v2902
  %v2904 = vsub.f32 1.0, %v2903
  %v2905 = vmul.f32 %v2902, %v2904
  %v2906 = vadd.f32 %v2902, %v2905
  %vm2907 = vweird.f32 %v2856
  %vm2908 = vweird.f32 %v2902
  %vm2909 = vmor %vm2907, %vm2908
  %v2910 = vsel %vm2909, %v2902, %v2906
  %v2911 = vand.u32 2147483647, %v2856
  %vm2912 = vcmp.eq.f32.partialorder %v2911, 8.507059e+37
  %v2913 = vand.u32 %v2856, 2147483648
  %v2914 = vor.u32 1.1754944e-38, %v2913
  %v2915 = vsel %vm2912, %v2914, %v2910
  %v2916 = vmul.f32 %v2837, %v2915
  %v2917 = vrcp.pop %v2859
  %v2918 = vmul.f32 %v2859, %v2917
  %v2919 = vsub.f32 1.0, %v2918
  %v2920 = vmul.f32 %v2917, %v2919
  %v2921 = vadd.f32 %v2917, %v2920
  %vm2922 = vweird.f32 %v2859
  %vm2923 = vweird.f32 %v2917
  %vm2924 = vmor %vm2922, %vm2923
  %v2925 = vsel %vm2924, %v2917, %v2921
  %v2926 = vand.u32 2147483647, %v2859
  %vm2927 = vcmp.eq.f32.partialorder %v2926, 8.507059e+37
  %v2928 = vand.u32 %v2859, 2147483648
  %v2929 = vor.u32 1.1754944e-38, %v2928
  %v2930 = vsel %vm2927, %v2929, %v2925
  %v2931 = vmul.f32 %v2839, %v2930
  %v2932 = vrcp.pop %v2862
  %v2933 = vmul.f32 %v2862, %v2932
  %v2934 = vsub.f32 1.0, %v2933
  %v2935 = vmul.f32 %v2932, %v2934
  %v2936 = vadd.f32 %v2932, %v2935
  %vm2937 = vweird.f32 %v2862
  %vm2938 = vweird.f32 %v2932
  %vm2939 = vmor %vm2937, %vm2938
  %v2940 = vsel %vm2939, %v2932, %v2936
  %v2941 = vand.u32 2147483647, %v2862
  %vm2942 = vcmp.eq.f32.partialorder %v2941, 8.507059e+37
  %v2943 = vand.u32 %v2862, 2147483648
  %v2944 = vor.u32 1.1754944e-38, %v2943
  %v2945 = vsel %vm2942, %v2944, %v2940
  %v2946 = vmul.f32 %v2841, %v2945
  %v2947 = vrcp.pop %v2865
  %v2948 = vmul.f32 %v2865, %v2947
  %v2949 = vsub.f32 1.0, %v2948
  %v2950 = vmul.f32 %v2947, %v2949
  %v2951 = vadd.f32 %v2947, %v2950
  %vm2952 = vweird.f32 %v2865
  %vm2953 = vweird.f32 %v2947
  %vm2954 = vmor %vm2952, %vm2953
  %v2955 = vsel %vm2954, %v2947, %v2951
  %v2956 = vand.u32 2147483647, %v2865
  %vm2957 = vcmp.eq.f32.partialorder %v2956, 8.507059e+37
  %v2958 = vand.u32 %v2865, 2147483648
  %v2959 = vor.u32 1.1754944e-38, %v2958
  %v2960 = vsel %vm2957, %v2959, %v2955
  %v2961 = vmul.f32 %v2843, %v2960
  %v2962 = vrcp.pop %v2868
  %v2963 = vmul.f32 %v2868, %v2962
  %v2964 = vsub.f32 1.0, %v2963
  %v2965 = vmul.f32 %v2962, %v2964
  %v2966 = vadd.f32 %v2962, %v2965
  %vm2967 = vweird.f32 %v2868
  %vm2968 = vweird.f32 %v2962
  %vm2969 = vmor %vm2967, %vm2968
  %v2970 = vsel %vm2969, %v2962, %v2966
  %v2971 = vand.u32 2147483647, %v2868
  %vm2972 = vcmp.eq.f32.partialorder %v2971, 8.507059e+37
  %v2973 = vand.u32 %v2868, 2147483648
  %v2974 = vor.u32 1.1754944e-38, %v2973
  %v2975 = vsel %vm2972, %v2974, %v2970
  %v2976 = vmul.f32 %v2845, %v2975
  %v2977 = vrcp.pop %v2871
  %v2978 = vmul.f32 %v2871, %v2977
  %v2979 = vsub.f32 1.0, %v2978
  %v2980 = vmul.f32 %v2977, %v2979
  %v2981 = vadd.f32 %v2977, %v2980
  %vm2982 = vweird.f32 %v2871
  %vm2983 = vweird.f32 %v2977
  %vm2984 = vmor %vm2982, %vm2983
  %v2985 = vsel %vm2984, %v2977, %v2981
  %v2986 = vand.u32 2147483647, %v2871
  %vm2987 = vcmp.eq.f32.partialorder %v2986, 8.507059e+37
  %v2988 = vand.u32 %v2871, 2147483648
  %v2989 = vor.u32 1.1754944e-38, %v2988
  %v2990 = vsel %vm2987, %v2989, %v2985
  %v2991 = vmul.f32 %v2847, %v2990
  %2992 = vrot.lane.b32.xlu0 %v1658, 32
  %v2993 = vpop.permute.xlu0 %2992
  %2994 = vrot.lane.b32.xlu0 %v1661, 32
  %v2995 = vpop.permute.xlu0 %2994
  %2996 = vrot.lane.b32.xlu0 %v1664, 32
  %v2997 = vpop.permute.xlu0 %2996
  %2998 = vrot.lane.b32.xlu0 %v1667, 32
  %v2999 = vpop.permute.xlu0 %2998
  %3000 = vrot.lane.b32.xlu0 %v1670, 32
  %v3001 = vpop.permute.xlu0 %3000
  %3002 = vrot.lane.b32.xlu0 %v1673, 32
  %v3003 = vpop.permute.xlu0 %3002
  %3004 = vrot.lane.b32.xlu0 %v1676, 32
  %v3005 = vpop.permute.xlu0 %3004
  %3006 = vrot.lane.b32.xlu0 %v1679, 32
  %v3007 = vpop.permute.xlu0 %3006
  %v3017 = vsel %vm203, %v2886, 0
  %v3020 = vsel %vm203, %v2901, 0
  %v3023 = vsel %vm203, %v2916, 0
  %v3026 = vsel %vm203, %v2931, 0
  %v3029 = vsel %vm203, %v2946, 0
  %v3032 = vsel %vm203, %v2961, 0
  %v3035 = vsel %vm203, %v2976, 0
  %v3038 = vsel %vm203, %v2991, 0
  %3040 = vmatpush.msra.mxu0 0.0
  %3041 = vmatpush.msra.mxu0 0.0
  %3042 = vmatpush.msra.mxu0 0.0
  %3043 = vmatpush.msra.mxu0 0.0
  %3044 = vmatpush.msra.mxu0 0.0
  %3045 = vmatpush.msra.mxu0 0.0
  %3046 = vmatpush.msra.mxu0 0.0
  %3047 = vmatpush.msra.mxu0 0.0
  %3048 = vmatpush.msra.mxu0 %v3007
  %3049 = vmatpush.msra.mxu0 %v3005
  %3050 = vmatpush.msra.mxu0 %v3003
  %3051 = vmatpush.msra.mxu0 %v3001
  %3052 = vmatpush.msra.mxu0 %v2999
  %3053 = vmatpush.msra.mxu0 %v2997
  %3054 = vmatpush.msra.mxu0 %v2995
  %3055 = vmatpush.msra.mxu0 %v2993
  %3056 = vmatmul.f32.gmra.mxu0 %v3017
  %v3057 = vpop.f32.mrf.mxu0
  %v3058 = vadd.f32 0.0, %v3057
  %3059 = vmatmul.f32.gmra.mxu0 %v3020
  %v3060 = vpop.f32.mrf.mxu0
  %v3061 = vadd.f32 0.0, %v3060
  %3062 = vmatmul.f32.gmra.mxu0 %v3023
  %v3063 = vpop.f32.mrf.mxu0
  %v3064 = vadd.f32 0.0, %v3063
  %3065 = vmatmul.f32.gmra.mxu0 %v3026
  %v3066 = vpop.f32.mrf.mxu0
  %v3067 = vadd.f32 0.0, %v3066
  %3068 = vmatmul.f32.gmra.mxu0 %v3029
  %v3069 = vpop.f32.mrf.mxu0
  %v3070 = vadd.f32 0.0, %v3069
  %3071 = vmatmul.f32.gmra.mxu0 %v3032
  %v3072 = vpop.f32.mrf.mxu0
  %v3073 = vadd.f32 0.0, %v3072
  %3074 = vmatmul.f32.gmra.mxu0 %v3035
  %v3075 = vpop.f32.mrf.mxu0
  %v3076 = vadd.f32 0.0, %v3075
  %3077 = vmatmul.f32.gmra.mxu0 %v3038
  %v3078 = vpop.f32.mrf.mxu0
  %v3079 = vadd.f32 0.0, %v3078
  %3080 = vdwg.mxu0
  %v3081 = vadd.f32 %v2719, %v3058
  %v3082 = vadd.f32 %v2720, %v3061
  %v3083 = vadd.f32 %v2721, %v3064
  %v3084 = vadd.f32 %v2722, %v3067
  %v3085 = vadd.f32 %v2723, %v3070
  %v3086 = vadd.f32 %v2724, %v3073
  %v3087 = vadd.f32 %v2725, %v3076
  %v3088 = vadd.f32 %v2726, %v3079
  %v3089 = vadd.f32 %v3081, %v1548
  %v3090 = vadd.f32 %v3082, %v1548
  %v3091 = vadd.f32 %v3083, %v1548
  %v3092 = vadd.f32 %v3084, %v1548
  %v3093 = vadd.f32 %v3085, %v1548
  %v3094 = vadd.f32 %v3086, %v1548
  %v3095 = vadd.f32 %v3087, %v1548
  %v3096 = vadd.f32 %v3088, %v1548
  %s3097 = scalar_lea.vmem %s3, 64
  %3098 = vst.msk [vmem:[%s3097] sm:$0xff] %vm31, %v3089
  %3099 = vst.msk [vmem:[%s3097 + $0x8] sm:$0xff] %vm31, %v3090
  %3100 = vst.msk [vmem:[%s3097 + $0x10] sm:$0xff] %vm31, %v3091
  %3101 = vst.msk [vmem:[%s3097 + $0x18] sm:$0xff] %vm31, %v3092
  %3102 = vst.msk [vmem:[%s3097 + $0x20] sm:$0xff] %vm31, %v3093
  %3103 = vst.msk [vmem:[%s3097 + $0x28] sm:$0xff] %vm31, %v3094
  %3104 = vst.msk [vmem:[%s3097 + $0x30] sm:$0xff] %vm31, %v3095
  %3105 = vst.msk [vmem:[%s3097 + $0x38] sm:$0xff] %vm31, %v3096
  // Predicated region
  $region14: #{tpu_custom_call.1} parent=0 // pred_check
    _
  $region15: #{tpu_custom_call.1} parent=0 // pred_check_branch
    %3107 = sbr.rel (0) target = $region17
  $region16: #{tpu_custom_call.1} parent=0 // pred_region
    _
  $region17: #{tpu_custom_call.1} parent=0 // pred_fallthru
    _
  // Predicated region
  $region18: #{tpu_custom_call.1} parent=0 // pred_check
    _
  $region19: #{tpu_custom_call.1} parent=0 // pred_check_branch
    %3109 = sbr.rel (0) target = $region21
  $region20: #{tpu_custom_call.1} parent=0 // pred_region
    _
  $region21: #{tpu_custom_call.1} parent=0 // pred_fallthru
    _

</llo_original>
